<compile_context>
chip_gen: v6e
topology: v6e:2x2x1
jax: 0.10.0
libtpu: 0.0.40
codegen_flags: <defaults>
</compile_context>

<pallas_src>
import numpy as np
import jax
import jax.numpy as jnp
from jax.experimental import pallas as pl
from jax.experimental.pallas import tpu as pltpu

HIDDEN = 128          # config.hidden_size        (real model: 768)
IMG_FEAT = 256        # config.image_feat_size    (real model: 768)
ANGLE_FEAT = 4        # config.angle_feat_size
LOC_FEAT_RAW = ANGLE_FEAT + 3        # 7
LOC_FEAT_PACK = 8                    # 7 loc features + nav-type id (as float)
NAV_PAD = 8                          # nav-type table (3, H) zero-padded to (8, H)
N_VEC = 9                            # number of packed (1, H) parameter vectors
VEC_PAD = 16                         # packed vector block rows (sublane aligned)
EPS = 1e-12


def _layer_norm(x, gamma, beta):
    mu = jnp.mean(x, axis=-1, keepdims=True)
    xc = x - mu
    var = jnp.mean(xc * xc, axis=-1, keepdims=True)
    return xc * jax.lax.rsqrt(var + EPS) * gamma + beta


def image_embeddings_kernel(view_ref, loc_ref, w_img_ref, w_loc_ref,
                            nav_emb_ref, pvec_ref, out_ref):
    pv = pvec_ref[...]                                  # (16, H) packed params
    b_img, g_img, be_img = pv[0:1], pv[1:2], pv[2:3]
    b_loc, g_loc, be_loc = pv[3:4], pv[4:5], pv[5:6]
    type_emb, g_fin, be_fin = pv[6:7], pv[7:8], pv[8:9]

    # img branch: LN(img_linear(view_fts)).  Inputs may be bf16; accumulation
    # is forced to f32 and all LN math stays f32.
    img = jnp.dot(view_ref[...], w_img_ref[...],
                  preferred_element_type=jnp.float32) + b_img
    img = _layer_norm(img, g_img, be_img)

    # loc branch: LN(loc_linear(loc_fts)).  Column 7 carries the nav-type id;
    # the corresponding weight row is zero, so it does not affect the linear.
    loc_pack = loc_ref[...]                             # (tm, 8) f32
    loc = jnp.dot(loc_pack, w_loc_ref[...],
                  preferred_element_type=jnp.float32) + b_loc
    loc = _layer_norm(loc, g_loc, be_loc)

    # nav_type_embedding(traj_nav_types) as one-hot matmul on the padded table.
    # NOTE: ids outside [0, NAV_PAD) silently produce a zero embedding.
    nav_ids = loc_pack[:, LOC_FEAT_RAW:LOC_FEAT_PACK].astype(jnp.int32)  # (tm,1)
    col = jax.lax.broadcasted_iota(jnp.int32, (nav_ids.shape[0], NAV_PAD), 1)
    onehot = (col == nav_ids).astype(jnp.float32)                        # (tm,8)
    nav = jnp.dot(onehot, nav_emb_ref[...],
                  preferred_element_type=jnp.float32)                    # (tm,H)

    # sum + broadcast token-type embedding (row 1) + final LN.
    # dropout: eval mode -> identity.
    x = img + loc + nav + type_emb
    out_ref[...] = _layer_norm(x, g_fin, be_fin).astype(out_ref.dtype)


def _pick_row_tile(m, tm_max):
    """Largest multiple-of-16 row tile <= tm_max that keeps >=2 grid steps.

    Multiple of 16 (not 8) so both the f32 and bf16 input layouts are
    sublane-aligned.  >=2 steps keeps the "parallel" grid axis splittable
    across the two v7x TensorCores.
    """
    half = -(-m // 2)                 # ceil(m / 2)
    tm = -(-half // 16) * 16          # round up to bf16 sublane multiple
    return max(16, min(tm_max, tm))


def image_embeddings_forward(view_fts, loc_fts, nav_types, params, *,
                             tm_max=1024, input_dtype=jnp.float32):
    N, L, F = view_fts.shape
    assert F == IMG_FEAT
    M = N * L

    view2 = view_fts.reshape(M, IMG_FEAT).astype(input_dtype)
    # Fold nav ids (as float) into column 7 of the loc stream: one input stream,
    # no separate jnp.pad pass and no extra int32 side channel.
    loc_pack = jnp.concatenate(
        [loc_fts.reshape(M, LOC_FEAT_RAW),
         nav_types.reshape(M, 1).astype(jnp.float32)], axis=-1)

    tm = _pick_row_tile(M, tm_max)
    n_blocks = pl.cdiv(M, tm)
    mp = n_blocks * tm
    if mp != M:                       # ragged tail: pad rows, slice off after
        view2 = jnp.pad(view2, ((0, mp - M), (0, 0)))
        loc_pack = jnp.pad(loc_pack, ((0, mp - M), (0, 0)))

    row = lambda i: (i, 0)            # row-tiled data streams
    rep = lambda i: (0, 0)            # replicated (resident) parameter blocks

    out = pl.pallas_call(
        image_embeddings_kernel,
        out_shape=jax.ShapeDtypeStruct((mp, HIDDEN), jnp.float32),
        grid=(n_blocks,),
        in_specs=[
            pl.BlockSpec((tm, IMG_FEAT), row),
            pl.BlockSpec((tm, LOC_FEAT_PACK), row),
            pl.BlockSpec((IMG_FEAT, HIDDEN), rep),
            pl.BlockSpec((LOC_FEAT_PACK, HIDDEN), rep),
            pl.BlockSpec((NAV_PAD, HIDDEN), rep),
            pl.BlockSpec((VEC_PAD, HIDDEN), rep),
        ],
        out_specs=pl.BlockSpec((tm, HIDDEN), row),
        compiler_params=pltpu.CompilerParams(
            dimension_semantics=("parallel",)),
    )(view2, loc_pack,
      params["w_img"].astype(input_dtype),
      params["w_loc"], params["nav_emb"], params["pvec"])
    return out[:M].reshape(N, L, HIDDEN)


def make_params(key):
    ks = jax.random.split(key, 10)
    # Linear weights stored transposed relative to PyTorch: (in, out).
    w_img = jax.random.normal(ks[0], (IMG_FEAT, HIDDEN), jnp.float32) * 0.02
    b_img = jax.random.normal(ks[1], (HIDDEN,), jnp.float32) * 0.02
    w_loc = jax.random.normal(ks[2], (LOC_FEAT_RAW, HIDDEN), jnp.float32) * 0.02
    b_loc = jax.random.normal(ks[3], (HIDDEN,), jnp.float32) * 0.02
    nav_tbl = jax.random.normal(ks[4], (3, HIDDEN), jnp.float32) * 0.02
    type_tbl = jax.random.normal(ks[5], (2, HIDDEN), jnp.float32) * 0.02
    g_img = 1.0 + 0.1 * jax.random.normal(ks[6], (HIDDEN,), jnp.float32)
    g_loc = 1.0 + 0.1 * jax.random.normal(ks[7], (HIDDEN,), jnp.float32)
    g_fin = 1.0 + 0.1 * jax.random.normal(ks[8], (HIDDEN,), jnp.float32)
    be = 0.1 * jax.random.normal(ks[9], (3, HIDDEN), jnp.float32)
    be_img, be_loc, be_fin = be[0], be[1], be[2]

    # Nine (1, H) vectors packed into one replicated (16, H) block:
    # [b_img, g_img, be_img, b_loc, g_loc, be_loc,
    #  type_emb (= type_embed_layer(ones(1,1)) == row 1), g_fin, be_fin]
    pvec = jnp.pad(
        jnp.stack([b_img, g_img, be_img, b_loc, g_loc, be_loc,
                   type_tbl[1], g_fin, be_fin], axis=0),
        ((0, VEC_PAD - N_VEC), (0, 0)))

    return {
        "w_img": w_img,
        "w_loc": jnp.pad(w_loc, ((0, LOC_FEAT_PACK - LOC_FEAT_RAW), (0, 0))),
        "nav_emb": jnp.pad(nav_tbl, ((0, NAV_PAD - 3), (0, 0))),
        "pvec": pvec,
    }


def reference(view_fts, loc_fts, nav_types, params):
    def ln(x, g, b):
        mu = x.mean(-1, keepdims=True)
        var = ((x - mu) ** 2).mean(-1, keepdims=True)
        return (x - mu) / jnp.sqrt(var + EPS) * g + b
    pv = params["pvec"]
    img = ln(view_fts @ params["w_img"] + pv[0], pv[1], pv[2])
    loc = ln(loc_fts @ params["w_loc"][:LOC_FEAT_RAW] + pv[3], pv[4], pv[5])
    nav = params["nav_emb"][nav_types]
    x = img + loc + nav + pv[6]
    return ln(x, pv[7], pv[8])


if __name__ == "__main__":
    key = jax.random.PRNGKey(0)
    k_par, k_view, k_loc, k_nav, k_len = jax.random.split(key, 5)

    # 13 viewpoints x 36 panorama views -> M = 468 tokens (deliberately NOT a
    # multiple of the row tile, to exercise the cdiv + padding path; the tile
    # picker gives tm=240 -> 2 grid steps, so the v7x megacore split is live).
    N, L = 13, 36
    params = make_params(k_par)
    traj_view_img_fts = jax.random.normal(k_view, (N, L, IMG_FEAT), jnp.float32)
    traj_loc_fts = jax.random.normal(k_loc, (N, L, LOC_FEAT_RAW), jnp.float32)
    traj_nav_types = jax.random.randint(k_nav, (N, L), 0, 3, jnp.int32)
    traj_vp_view_lens = jax.random.randint(k_len, (N,), 1, L + 1, jnp.int32)
    traj_step_lens = [6, 7]                      # static split sizes (sum == N)

    # ---- Pallas kernel (hot path, f32) ----
    traj_embeds = image_embeddings_forward(
        traj_view_img_fts, traj_loc_fts, traj_nav_types, params)
    traj_embeds = jax.block_until_ready(traj_embeds)

    # ---- correctness check vs plain-JAX reference (strict, f32) ----
    ref = reference(traj_view_img_fts, traj_loc_fts, traj_nav_types, params)
    np.testing.assert_allclose(np.asarray(traj_embeds), np.asarray(ref),
                               rtol=1e-5, atol=1e-5)

    # ---- optional bf16-input path (v6e/v7x HBM cut; accum + LN stay f32) ----
    traj_embeds_bf16 = jax.block_until_ready(image_embeddings_forward(
        traj_view_img_fts, traj_loc_fts, traj_nav_types, params,
        input_dtype=jnp.bfloat16))
    params_q = dict(params)
    params_q["w_img"] = params["w_img"].astype(jnp.bfloat16).astype(jnp.float32)
    ref_bf16 = reference(
        traj_view_img_fts.astype(jnp.bfloat16).astype(jnp.float32),
        traj_loc_fts, traj_nav_types, params_q)
    np.testing.assert_allclose(np.asarray(traj_embeds_bf16),
                               np.asarray(ref_bf16), rtol=5e-3, atol=5e-3)

    # ---- glue matching the remainder of forward() ----
    traj_vp_lens = traj_vp_view_lens             # has_obj == False
    traj_masks = jnp.arange(L)[None, :] < traj_vp_lens[:, None]   # gen_seq_masks
    splits = np.cumsum(traj_step_lens)[:-1].tolist()
    split_traj_embeds = jnp.split(traj_embeds, splits, axis=0)
    split_traj_vp_lens = jnp.split(traj_vp_lens, splits, axis=0)
    assert len(split_traj_embeds) == len(traj_step_lens)
    assert split_traj_embeds[0].shape == (traj_step_lens[0], L, HIDDEN)
    assert traj_masks.shape == (N, L)

    print("KERNEL_OK")
</pallas_src>

<mosaic_0001>
module attributes {stable_mosaic.version = 11 : i64} {
  func.func @image_embeddings_kernel(%arg0: i32, %arg1: memref<240x256xf32, #tpu.memory_space<vmem>>, %arg2: memref<240x8xf32, #tpu.memory_space<vmem>>, %arg3: memref<256x128xf32, #tpu.memory_space<vmem>>, %arg4: memref<8x128xf32, #tpu.memory_space<vmem>>, %arg5: memref<8x128xf32, #tpu.memory_space<vmem>>, %arg6: memref<16x128xf32, #tpu.memory_space<vmem>>, %arg7: memref<240x128xf32, #tpu.memory_space<vmem>>) attributes {dimension_semantics = [#tpu.dimension_semantics<parallel>], iteration_bounds = array<i64: 2>, scalar_prefetch = 0 : i64, scratch_operands = 0 : i64, tpu.core_type = #tpu.core_type<tc>, window_params = [{transform_indices = @transform_0, window_bounds = array<i64: 240, 256>}, {transform_indices = @transform_1, window_bounds = array<i64: 240, 8>}, {pipeline_mode = #tpu.pipeline_mode<synchronous>, transform_indices = @transform_2, window_bounds = array<i64: 256, 128>}, {pipeline_mode = #tpu.pipeline_mode<synchronous>, transform_indices = @transform_3, window_bounds = array<i64: 8, 128>}, {pipeline_mode = #tpu.pipeline_mode<synchronous>, transform_indices = @transform_4, window_bounds = array<i64: 8, 128>}, {pipeline_mode = #tpu.pipeline_mode<synchronous>, transform_indices = @transform_5, window_bounds = array<i64: 16, 128>}, {transform_indices = @transform_6, window_bounds = array<i64: 240, 128>}]} {
    %c0 = arith.constant 0 : index
    %c0_0 = arith.constant 0 : index
    %0 = vector.load %arg6[%c0, %c0_0] : memref<16x128xf32, #tpu.memory_space<vmem>>, vector<16x128xf32>
    %1 = vector.extract_strided_slice %0 {offsets = [0, 0], sizes = [1, 128], strides = [1, 1]} : vector<16x128xf32> to vector<1x128xf32>
    %2 = vector.extract_strided_slice %0 {offsets = [1, 0], sizes = [1, 128], strides = [1, 1]} : vector<16x128xf32> to vector<1x128xf32>
    %3 = vector.extract_strided_slice %0 {offsets = [2, 0], sizes = [1, 128], strides = [1, 1]} : vector<16x128xf32> to vector<1x128xf32>
    %4 = vector.extract_strided_slice %0 {offsets = [3, 0], sizes = [1, 128], strides = [1, 1]} : vector<16x128xf32> to vector<1x128xf32>
    %5 = vector.extract_strided_slice %0 {offsets = [4, 0], sizes = [1, 128], strides = [1, 1]} : vector<16x128xf32> to vector<1x128xf32>
    %6 = vector.extract_strided_slice %0 {offsets = [5, 0], sizes = [1, 128], strides = [1, 1]} : vector<16x128xf32> to vector<1x128xf32>
    %7 = vector.extract_strided_slice %0 {offsets = [6, 0], sizes = [1, 128], strides = [1, 1]} : vector<16x128xf32> to vector<1x128xf32>
    %8 = vector.extract_strided_slice %0 {offsets = [7, 0], sizes = [1, 128], strides = [1, 1]} : vector<16x128xf32> to vector<1x128xf32>
    %9 = vector.extract_strided_slice %0 {offsets = [8, 0], sizes = [1, 128], strides = [1, 1]} : vector<16x128xf32> to vector<1x128xf32>
    %c0_1 = arith.constant 0 : index
    %c0_2 = arith.constant 0 : index
    %10 = vector.load %arg1[%c0_1, %c0_2] : memref<240x256xf32, #tpu.memory_space<vmem>>, vector<240x256xf32>
    %c0_3 = arith.constant 0 : index
    %c0_4 = arith.constant 0 : index
    %11 = vector.load %arg3[%c0_3, %c0_4] : memref<256x128xf32, #tpu.memory_space<vmem>>, vector<256x128xf32>
    %cst = arith.constant dense<0.000000e+00> : vector<240x128xf32>
    %12 = tpu.matmul %10, %11, %cst {dimension_numbers = #tpu.dot_dimension_numbers<[1], [0], [0], [1], [0, 0, 1, 1], [], []>} : vector<240x256xf32>, vector<256x128xf32>, vector<240x128xf32> -> vector<240x128xf32>
    %13 = vector.broadcast %1 : vector<1x128xf32> to vector<240x128xf32>
    %14 = arith.addf %12, %13 : vector<240x128xf32>
    %cst_5 = arith.constant dense<0.000000e+00> : vector<240xf32>
    %15 = vector.multi_reduction <add>, %14, %cst_5 [1] : vector<240x128xf32> to vector<240xf32>
    %16 = vector.shape_cast %15 : vector<240xf32> to vector<240x1xf32>
    %cst_6 = arith.constant 1.280000e+02 : f32
    %17 = vector.broadcast %cst_6 : f32 to vector<240x1xf32>
    %18 = arith.divf %16, %17 : vector<240x1xf32>
    %19 = vector.broadcast %18 : vector<240x1xf32> to vector<240x128xf32>
    %20 = arith.subf %14, %19 : vector<240x128xf32>
    %21 = arith.mulf %20, %20 : vector<240x128xf32>
    %cst_7 = arith.constant dense<0.000000e+00> : vector<240xf32>
    %22 = vector.multi_reduction <add>, %21, %cst_7 [1] : vector<240x128xf32> to vector<240xf32>
    %23 = vector.shape_cast %22 : vector<240xf32> to vector<240x1xf32>
    %cst_8 = arith.constant 1.280000e+02 : f32
    %24 = vector.broadcast %cst_8 : f32 to vector<240x1xf32>
    %25 = arith.divf %23, %24 : vector<240x1xf32>
    %cst_9 = arith.constant 9.99999996E-13 : f32
    %26 = vector.broadcast %cst_9 : f32 to vector<240x1xf32>
    %27 = arith.addf %25, %26 : vector<240x1xf32>
    %28 = math.rsqrt %27 : vector<240x1xf32>
    %29 = vector.broadcast %28 : vector<240x1xf32> to vector<240x128xf32>
    %30 = arith.mulf %20, %29 : vector<240x128xf32>
    %31 = vector.broadcast %2 : vector<1x128xf32> to vector<240x128xf32>
    %32 = arith.mulf %30, %31 : vector<240x128xf32>
    %33 = vector.broadcast %3 : vector<1x128xf32> to vector<240x128xf32>
    %34 = arith.addf %32, %33 : vector<240x128xf32>
    %c0_10 = arith.constant 0 : index
    %c0_11 = arith.constant 0 : index
    %35 = vector.load %arg2[%c0_10, %c0_11] : memref<240x8xf32, #tpu.memory_space<vmem>>, vector<240x8xf32>
    %c0_12 = arith.constant 0 : index
    %c0_13 = arith.constant 0 : index
    %36 = vector.load %arg4[%c0_12, %c0_13] : memref<8x128xf32, #tpu.memory_space<vmem>>, vector<8x128xf32>
    %cst_14 = arith.constant dense<0.000000e+00> : vector<240x128xf32>
    %37 = tpu.matmul %35, %36, %cst_14 {dimension_numbers = #tpu.dot_dimension_numbers<[1], [0], [0], [1], [0, 0, 1, 1], [], []>} : vector<240x8xf32>, vector<8x128xf32>, vector<240x128xf32> -> vector<240x128xf32>
    %38 = vector.broadcast %4 : vector<1x128xf32> to vector<240x128xf32>
    %39 = arith.addf %37, %38 : vector<240x128xf32>
    %cst_15 = arith.constant dense<0.000000e+00> : vector<240xf32>
    %40 = vector.multi_reduction <add>, %39, %cst_15 [1] : vector<240x128xf32> to vector<240xf32>
    %41 = vector.shape_cast %40 : vector<240xf32> to vector<240x1xf32>
    %cst_16 = arith.constant 1.280000e+02 : f32
    %42 = vector.broadcast %cst_16 : f32 to vector<240x1xf32>
    %43 = arith.divf %41, %42 : vector<240x1xf32>
    %44 = vector.broadcast %43 : vector<240x1xf32> to vector<240x128xf32>
    %45 = arith.subf %39, %44 : vector<240x128xf32>
    %46 = arith.mulf %45, %45 : vector<240x128xf32>
    %cst_17 = arith.constant dense<0.000000e+00> : vector<240xf32>
    %47 = vector.multi_reduction <add>, %46, %cst_17 [1] : vector<240x128xf32> to vector<240xf32>
    %48 = vector.shape_cast %47 : vector<240xf32> to vector<240x1xf32>
    %cst_18 = arith.constant 1.280000e+02 : f32
    %49 = vector.broadcast %cst_18 : f32 to vector<240x1xf32>
    %50 = arith.divf %48, %49 : vector<240x1xf32>
    %cst_19 = arith.constant 9.99999996E-13 : f32
    %51 = vector.broadcast %cst_19 : f32 to vector<240x1xf32>
    %52 = arith.addf %50, %51 : vector<240x1xf32>
    %53 = math.rsqrt %52 : vector<240x1xf32>
    %54 = vector.broadcast %53 : vector<240x1xf32> to vector<240x128xf32>
    %55 = arith.mulf %45, %54 : vector<240x128xf32>
    %56 = vector.broadcast %5 : vector<1x128xf32> to vector<240x128xf32>
    %57 = arith.mulf %55, %56 : vector<240x128xf32>
    %58 = vector.broadcast %6 : vector<1x128xf32> to vector<240x128xf32>
    %59 = arith.addf %57, %58 : vector<240x128xf32>
    %60 = vector.extract_strided_slice %35 {offsets = [0, 7], sizes = [240, 1], strides = [1, 1]} : vector<240x8xf32> to vector<240x1xf32>
    %61 = arith.fptosi %60 : vector<240x1xf32> to vector<240x1xi32>
    %62 = tpu.iota {dimensions = array<i32: 1>} : vector<240x8xi32>
    %63 = vector.broadcast %61 : vector<240x1xi32> to vector<240x8xi32>
    %64 = arith.cmpi eq, %62, %63 : vector<240x8xi32>
    %65 = arith.extui %64 : vector<240x8xi1> to vector<240x8xi32>
    %66 = arith.sitofp %65 : vector<240x8xi32> to vector<240x8xf32>
    %c0_20 = arith.constant 0 : index
    %c0_21 = arith.constant 0 : index
    %67 = vector.load %arg5[%c0_20, %c0_21] : memref<8x128xf32, #tpu.memory_space<vmem>>, vector<8x128xf32>
    %cst_22 = arith.constant dense<0.000000e+00> : vector<240x128xf32>
    %68 = tpu.matmul %66, %67, %cst_22 {dimension_numbers = #tpu.dot_dimension_numbers<[1], [0], [0], [1], [0, 0, 1, 1], [], []>} : vector<240x8xf32>, vector<8x128xf32>, vector<240x128xf32> -> vector<240x128xf32>
    %69 = arith.addf %34, %59 : vector<240x128xf32>
    %70 = arith.addf %69, %68 : vector<240x128xf32>
    %71 = vector.broadcast %7 : vector<1x128xf32> to vector<240x128xf32>
    %72 = arith.addf %70, %71 : vector<240x128xf32>
    %cst_23 = arith.constant dense<0.000000e+00> : vector<240xf32>
    %73 = vector.multi_reduction <add>, %72, %cst_23 [1] : vector<240x128xf32> to vector<240xf32>
    %74 = vector.shape_cast %73 : vector<240xf32> to vector<240x1xf32>
    %cst_24 = arith.constant 1.280000e+02 : f32
    %75 = vector.broadcast %cst_24 : f32 to vector<240x1xf32>
    %76 = arith.divf %74, %75 : vector<240x1xf32>
    %77 = vector.broadcast %76 : vector<240x1xf32> to vector<240x128xf32>
    %78 = arith.subf %72, %77 : vector<240x128xf32>
    %79 = arith.mulf %78, %78 : vector<240x128xf32>
    %cst_25 = arith.constant dense<0.000000e+00> : vector<240xf32>
    %80 = vector.multi_reduction <add>, %79, %cst_25 [1] : vector<240x128xf32> to vector<240xf32>
    %81 = vector.shape_cast %80 : vector<240xf32> to vector<240x1xf32>
    %cst_26 = arith.constant 1.280000e+02 : f32
    %82 = vector.broadcast %cst_26 : f32 to vector<240x1xf32>
    %83 = arith.divf %81, %82 : vector<240x1xf32>
    %cst_27 = arith.constant 9.99999996E-13 : f32
    %84 = vector.broadcast %cst_27 : f32 to vector<240x1xf32>
    %85 = arith.addf %83, %84 : vector<240x1xf32>
    %86 = math.rsqrt %85 : vector<240x1xf32>
    %87 = vector.broadcast %86 : vector<240x1xf32> to vector<240x128xf32>
    %88 = arith.mulf %78, %87 : vector<240x128xf32>
    %89 = vector.broadcast %8 : vector<1x128xf32> to vector<240x128xf32>
    %90 = arith.mulf %88, %89 : vector<240x128xf32>
    %91 = vector.broadcast %9 : vector<1x128xf32> to vector<240x128xf32>
    %92 = arith.addf %90, %91 : vector<240x128xf32>
    %c0_28 = arith.constant 0 : index
    %c0_29 = arith.constant 0 : index
    %93 = vector.load %arg7[%c0_28, %c0_29] : memref<240x128xf32, #tpu.memory_space<vmem>>, vector<240x128xf32>
    tpu.vector_store %arg7[%c0_28, %c0_29], %92 {strides = array<i32>} : memref<240x128xf32, #tpu.memory_space<vmem>>, vector<240x128xf32>,
    return
  }
  func.func @transform_0(%arg0: i32) -> (i32, i32) {
    %c0_i32 = arith.constant 0 : i32
    %c0_i32_0 = arith.constant 0 : i32
    return %arg0, %c0_i32 : i32, i32
  }
  func.func @transform_1(%arg0: i32) -> (i32, i32) {
    %c0_i32 = arith.constant 0 : i32
    %c0_i32_0 = arith.constant 0 : i32
    return %arg0, %c0_i32 : i32, i32
  }
  func.func @transform_2(%arg0: i32) -> (i32, i32) {
    %c0_i32 = arith.constant 0 : i32
    %c0_i32_0 = arith.constant 0 : i32
    %c0_i32_1 = arith.constant 0 : i32
    return %c0_i32, %c0_i32_0 : i32, i32
  }
  func.func @transform_3(%arg0: i32) -> (i32, i32) {
    %c0_i32 = arith.constant 0 : i32
    %c0_i32_0 = arith.constant 0 : i32
    %c0_i32_1 = arith.constant 0 : i32
    return %c0_i32, %c0_i32_0 : i32, i32
  }
  func.func @transform_4(%arg0: i32) -> (i32, i32) {
    %c0_i32 = arith.constant 0 : i32
    %c0_i32_0 = arith.constant 0 : i32
    %c0_i32_1 = arith.constant 0 : i32
    return %c0_i32, %c0_i32_0 : i32, i32
  }
  func.func @transform_5(%arg0: i32) -> (i32, i32) {
    %c0_i32 = arith.constant 0 : i32
    %c0_i32_0 = arith.constant 0 : i32
    %c0_i32_1 = arith.constant 0 : i32
    return %c0_i32, %c0_i32_0 : i32, i32
  }
  func.func @transform_6(%arg0: i32) -> (i32, i32) {
    %c0_i32 = arith.constant 0 : i32
    %c0_i32_0 = arith.constant 0 : i32
    return %arg0, %c0_i32 : i32, i32
  }
}

</mosaic_0001>

<llo_original>
// kernel: tpu_custom_call.1
$region0: #{tpu_custom_call.1}
  #allocation0 [shape = 'u32[]', space=smem, size = 0x4, offset = 0x4, fixed_abs, tag = 'smem constant byte address 0x4 - core index']
  #allocation1 [shape = 'u32[144,128]{1,0:T(1,128)}', space=vmem, size = 0x12000, scoped, tag = 'internal scratch']
  %s0 = inlined_call_operand.hbm [shape: f32[480,256], index: 0, kind: input, shape index: {}]
  %s1 = inlined_call_operand.vmem [shape: f32[480,8], index: 1, kind: input, shape index: {}]
  %s2 = inlined_call_operand.vmem [shape: f32[256,128], index: 2, kind: input, shape index: {}]
  %s3 = inlined_call_operand.vmem [shape: f32[8,128], index: 3, kind: input, shape index: {}]
  %s4 = inlined_call_operand.vmem [shape: f32[8,128], index: 4, kind: input, shape index: {}]
  %s5 = inlined_call_operand.vmem [shape: f32[16,128], index: 5, kind: input, shape index: {}]
  %s6 = inlined_call_operand.hbm [shape: f32[480,128], index: 6, kind: output, shape index: {}]
  %s7 = sld [smem:[#allocation0]]
  $region61: #{tpu_custom_call.1} parent=0
    _
  %s9 = ssub.s32 1, %s7
  %s10 = scalar_select 0, %s9, %s7
  $region1: #{tpu_custom_call.1} parent=0
    #allocation2 [shape = 'u8[491520]{0}', space=vmem, size = 0x78000, scoped, tag = 'input window, operand 0']
    #allocation3 [shape = 's32[2]{0}', space=sflag, size = 0x8, scoped, tag = 'scoped memory for tpu_custom_call.1']
    #allocation4 [shape = 's32[2]{0}', space=sflag, size = 0x8, scoped, tag = 'scoped memory for tpu_custom_call.1']
    #allocation5 [shape = 'u8[245760]{0}', space=vmem, size = 0x3c000, scoped, tag = 'output window, operand 0']
    %11 = vsyncpa [#allocation3], 0
    %s12 = scalar_lea.sflag [#allocation3], 1
    %13 = vsyncpa %s12, 0
    %14 = vsyncpa [#allocation4], 0
    %s15 = scalar_lea.sflag [#allocation4], 1
    %16 = vsyncpa %s15, 0
    loop: start=0, step=1, limit=4
    $region2: #{tpu_custom_call.1} parent=1 // loop_pre_header
      _
    $region3: #{tpu_custom_call.1} parent=1 // loop_header
      %s18 = sphi 0, %s22
      %p19 = scmp.ge.s32.totalorder %s18, 4
      %s28 = sphi 0, %s30
      %s31 = sphi 0, %s28
      %s32 = sphi 0, %s31
      %s48 = sphi 0, %s32
      %s54 = sphi 0, %s56
      %s57 = sphi 0, %s54
      %s58 = sphi 0, %s57
      %s74 = sphi 0, %s58
      %s78 = sphi 0, %s78
      %s80 = sphi 0, %s78
      %s81 = sphi 0, %s80
      %s95 = sphi 0, %s81
      %s99 = sphi 0, %s99
      %s101 = sphi 0, %s99
      %s102 = sphi 0, %s101
      %s116 = sphi 0, %s102
      %s120 = sphi 0, %s120
      %s122 = sphi 0, %s120
      %s123 = sphi 0, %s122
      %s137 = sphi 0, %s123
      %s141 = sphi 0, %s141
      %s143 = sphi 0, %s141
      %s144 = sphi 0, %s143
      %s158 = sphi 0, %s144
      %s164 = sphi 0, %s166
      %s167 = sphi 0, %s164
      %s168 = sphi 0, %s167
      %s184 = sphi 0, %s168
    $region4: #{tpu_custom_call.1} parent=1 // loop_header_branch
      %21 = sbr.rel (%p19) target = $region8
    $region5: #{tpu_custom_call.1} parent=1 // loop_body
      %s23 = ssub.s32 %s18, 1
      %s24 = ssub.s32 %s18, 2
      %s25 = sadd.s32 %s18, 1
      %s26 = ssub.s32 %s18, %s25
      %p27 = scmp.eq.s32.totalorder %s26, 0
      %s29 = sadd.s32 %s28, 1
      %s30 = scalar_select %p27, %s28, %s29
      %p33 = pneg %p27
      %p34 = scmp.eq.s32.totalorder %s18, 1
      %p35 = por %p33, %p34
      %p36 = scmp.ne.s32.totalorder %s28, %s31
      %p37 = scmp.eq.s32.totalorder %s18, 0
      %p38 = por %p36, %p37
      %p39 = scmp.ne.s32.totalorder %s28, %s31
      %p40 = scmp.eq.s32.totalorder %s23, 1
      %p41 = por %p39, %p40
      %p42 = scmp.ne.s32.totalorder %s31, %s32
      %p43 = scmp.eq.s32.totalorder %s23, 0
      %p44 = por %p42, %p43
      %p45 = scmp.ne.s32.totalorder %s31, %s32
      %p46 = scmp.eq.s32.totalorder %s24, 1
      %p47 = por %p45, %p46
      %p49 = scmp.ne.s32.totalorder %s32, %s48
      %p50 = scmp.eq.s32.totalorder %s24, 0
      %p51 = por %p49, %p50
      %s52 = ssub.s32 %s18, %s25
      %p53 = scmp.eq.s32.totalorder %s52, 0
      %s55 = sadd.s32 %s54, 1
      %s56 = scalar_select %p53, %s54, %s55
      %p59 = pneg %p53
      %p60 = scmp.eq.s32.totalorder %s18, 1
      %p61 = por %p59, %p60
      %p62 = scmp.ne.s32.totalorder %s54, %s57
      %p63 = scmp.eq.s32.totalorder %s18, 0
      %p64 = por %p62, %p63
      %p65 = scmp.ne.s32.totalorder %s54, %s57
      %p66 = scmp.eq.s32.totalorder %s23, 1
      %p67 = por %p65, %p66
      %p68 = scmp.ne.s32.totalorder %s57, %s58
      %p69 = scmp.eq.s32.totalorder %s23, 0
      %p70 = por %p68, %p69
      %p71 = scmp.ne.s32.totalorder %s57, %s58
      %p72 = scmp.eq.s32.totalorder %s24, 1
      %p73 = por %p71, %p72
      %p75 = scmp.ne.s32.totalorder %s58, %s74
      %p76 = scmp.eq.s32.totalorder %s24, 0
      %p77 = por %p75, %p76
      %s79 = sadd.s32 %s78, 1
      %p82 = scmp.eq.s32.totalorder %s18, 1
      %p83 = scmp.ne.s32.totalorder %s78, %s80
      %p84 = scmp.eq.s32.totalorder %s18, 0
      %p85 = por %p83, %p84
      %p86 = scmp.ne.s32.totalorder %s78, %s80
      %p87 = scmp.eq.s32.totalorder %s23, 1
      %p88 = por %p86, %p87
      %p89 = scmp.ne.s32.totalorder %s80, %s81
      %p90 = scmp.eq.s32.totalorder %s23, 0
      %p91 = por %p89, %p90
      %p92 = scmp.ne.s32.totalorder %s80, %s81
      %p93 = scmp.eq.s32.totalorder %s24, 1
      %p94 = por %p92, %p93
      %p96 = scmp.ne.s32.totalorder %s81, %s95
      %p97 = scmp.eq.s32.totalorder %s24, 0
      %p98 = por %p96, %p97
      %s100 = sadd.s32 %s99, 1
      %p103 = scmp.eq.s32.totalorder %s18, 1
      %p104 = scmp.ne.s32.totalorder %s99, %s101
      %p105 = scmp.eq.s32.totalorder %s18, 0
      %p106 = por %p104, %p105
      %p107 = scmp.ne.s32.totalorder %s99, %s101
      %p108 = scmp.eq.s32.totalorder %s23, 1
      %p109 = por %p107, %p108
      %p110 = scmp.ne.s32.totalorder %s101, %s102
      %p111 = scmp.eq.s32.totalorder %s23, 0
      %p112 = por %p110, %p111
      %p113 = scmp.ne.s32.totalorder %s101, %s102
      %p114 = scmp.eq.s32.totalorder %s24, 1
      %p115 = por %p113, %p114
      %p117 = scmp.ne.s32.totalorder %s102, %s116
      %p118 = scmp.eq.s32.totalorder %s24, 0
      %p119 = por %p117, %p118
      %s121 = sadd.s32 %s120, 1
      %p124 = scmp.eq.s32.totalorder %s18, 1
      %p125 = scmp.ne.s32.totalorder %s120, %s122
      %p126 = scmp.eq.s32.totalorder %s18, 0
      %p127 = por %p125, %p126
      %p128 = scmp.ne.s32.totalorder %s120, %s122
      %p129 = scmp.eq.s32.totalorder %s23, 1
      %p130 = por %p128, %p129
      %p131 = scmp.ne.s32.totalorder %s122, %s123
      %p132 = scmp.eq.s32.totalorder %s23, 0
      %p133 = por %p131, %p132
      %p134 = scmp.ne.s32.totalorder %s122, %s123
      %p135 = scmp.eq.s32.totalorder %s24, 1
      %p136 = por %p134, %p135
      %p138 = scmp.ne.s32.totalorder %s123, %s137
      %p139 = scmp.eq.s32.totalorder %s24, 0
      %p140 = por %p138, %p139
      %s142 = sadd.s32 %s141, 1
      %p145 = scmp.eq.s32.totalorder %s18, 1
      %p146 = scmp.ne.s32.totalorder %s141, %s143
      %p147 = scmp.eq.s32.totalorder %s18, 0
      %p148 = por %p146, %p147
      %p149 = scmp.ne.s32.totalorder %s141, %s143
      %p150 = scmp.eq.s32.totalorder %s23, 1
      %p151 = por %p149, %p150
      %p152 = scmp.ne.s32.totalorder %s143, %s144
      %p153 = scmp.eq.s32.totalorder %s23, 0
      %p154 = por %p152, %p153
      %p155 = scmp.ne.s32.totalorder %s143, %s144
      %p156 = scmp.eq.s32.totalorder %s24, 1
      %p157 = por %p155, %p156
      %p159 = scmp.ne.s32.totalorder %s144, %s158
      %p160 = scmp.eq.s32.totalorder %s24, 0
      %p161 = por %p159, %p160
      %s162 = ssub.s32 %s18, %s25
      %p163 = scmp.eq.s32.totalorder %s162, 0
      %s165 = sadd.s32 %s164, 1
      %s166 = scalar_select %p163, %s164, %s165
      %p169 = pneg %p163
      %p170 = scmp.eq.s32.totalorder %s18, 1
      %p171 = por %p169, %p170
      %p172 = scmp.ne.s32.totalorder %s164, %s167
      %p173 = scmp.eq.s32.totalorder %s18, 0
      %p174 = por %p172, %p173
      %p175 = scmp.ne.s32.totalorder %s164, %s167
      %p176 = scmp.eq.s32.totalorder %s23, 1
      %p177 = por %p175, %p176
      %p178 = scmp.ne.s32.totalorder %s167, %s168
      %p179 = scmp.eq.s32.totalorder %s23, 0
      %p180 = por %p178, %p179
      %p181 = scmp.ne.s32.totalorder %s167, %s168
      %p182 = scmp.eq.s32.totalorder %s24, 1
      %p183 = por %p181, %p182
      %p185 = scmp.ne.s32.totalorder %s168, %s184
      %p186 = scmp.eq.s32.totalorder %s24, 0
      %p187 = por %p185, %p186
      %p188 = scmp.le.s32.totalorder 1, %s18
      %p189 = scmp.lt.s32.totalorder %s18, 3
      %p190 = pnand %p188, %p189
      %p191 = pneg %p190
      // Predicated region
      $region9: #{tpu_custom_call.1} parent=5 // pred_check
        _
      $region10: #{tpu_custom_call.1} parent=5 // pred_check_branch
        %193 = sbr.rel (%p190) target = $region12
      $region11: #{tpu_custom_call.1} parent=5 // pred_region
        %s194 = ssub.s32 %s18, 1
        // Predicated region
        $region13: #{tpu_custom_call.1} parent=11 // pred_check
          %p195 = pneg %p91
        $region14: #{tpu_custom_call.1} parent=11 // pred_check_branch
          %197 = sbr.rel (%p195) target = $region16
        $region15: #{tpu_custom_call.1} parent=11 // pred_region
          _
        $region16: #{tpu_custom_call.1} parent=11 // pred_fallthru
          _
        // Predicated region
        $region17: #{tpu_custom_call.1} parent=11 // pred_check
          %p198 = pneg %p112
        $region18: #{tpu_custom_call.1} parent=11 // pred_check_branch
          %200 = sbr.rel (%p198) target = $region20
        $region19: #{tpu_custom_call.1} parent=11 // pred_region
          _
        $region20: #{tpu_custom_call.1} parent=11 // pred_fallthru
          _
        // Predicated region
        $region21: #{tpu_custom_call.1} parent=11 // pred_check
          %p201 = pneg %p133
        $region22: #{tpu_custom_call.1} parent=11 // pred_check_branch
          %203 = sbr.rel (%p201) target = $region24
        $region23: #{tpu_custom_call.1} parent=11 // pred_region
          _
        $region24: #{tpu_custom_call.1} parent=11 // pred_fallthru
          _
        // Predicated region
        $region25: #{tpu_custom_call.1} parent=11 // pred_check
          %p204 = pneg %p154
        $region26: #{tpu_custom_call.1} parent=11 // pred_check_branch
          %206 = sbr.rel (%p204) target = $region28
        $region27: #{tpu_custom_call.1} parent=11 // pred_region
          _
        $region28: #{tpu_custom_call.1} parent=11 // pred_fallthru
          _
      $region12: #{tpu_custom_call.1} parent=5 // pred_fallthru
        _
      %p207 = scmp.lt.s32.totalorder %s18, 2
      // Predicated region
      $region29: #{tpu_custom_call.1} parent=5 // pred_check
        %p208 = pneg %p207
      $region30: #{tpu_custom_call.1} parent=5 // pred_check_branch
        %210 = sbr.rel (%p208) target = $region32
      $region31: #{tpu_custom_call.1} parent=5 // pred_region
        // Predicated region
        $region33: #{tpu_custom_call.1} parent=31 // pred_check
          %p211 = pneg %p38
        $region34: #{tpu_custom_call.1} parent=31 // pred_check_branch
          %213 = sbr.rel (%p211) target = $region36
        $region35: #{tpu_custom_call.1} parent=31 // pred_region
          %s214 = sand.u32 %s28, 1
          %s215 = scalar_lea.sflag [#allocation3], %s214
          %s216 = sand.u32 %s28, 1
          %s217 = smul.addr %s216, 480
          %s218 = scalar_lea.vmem [#allocation2], %s217
          %s219 = smul.u32 30, %s18
          %s221 = ssub.s32 7680, 7680
          %222 = vsyncadd %s215, %s221
          %s223 = smul.addr %s219, 2
          %s224 = smul.addr %s223, 128
          %s225 = scalar_lea.hbm %s0, %s224
          %s226 = sshll.u32 %s218, 4
          %s227 = int_to_ptr.vmem [resolvable:$true] %s226
          %232 = dma.hbm_to_vmem [thread:$0]  %s225, 7680, %s227, %s215, 256, 256, 16
        $region36: #{tpu_custom_call.1} parent=31 // pred_fallthru
          _
        // Predicated region
        $region37: #{tpu_custom_call.1} parent=31 // pred_check
          %p233 = pneg %p64
        $region38: #{tpu_custom_call.1} parent=31 // pred_check_branch
          %235 = sbr.rel (%p233) target = $region40
        $region39: #{tpu_custom_call.1} parent=31 // pred_region
          %s236 = smul.u32 30, %s18
          %p237 = scmp.lt.s32.totalorder %s236, 59
          %s238 = scalar_select %p237, %s236, 59
          %s239 = smul.addr %s238, 8
          %s240 = scalar_lea.vmem %s1, %s239
          %s241 = smul.u32 30, %s18
        $region40: #{tpu_custom_call.1} parent=31 // pred_fallthru
          _
      $region32: #{tpu_custom_call.1} parent=5 // pred_fallthru
        _
      %p242 = scmp.le.s32.totalorder 1, %s18
      %p243 = scmp.lt.s32.totalorder %s18, 3
      %p244 = pnand %p242, %p243
      %p245 = pneg %p244
      // Predicated region
      $region41: #{tpu_custom_call.1} parent=5 // pred_check
        _
      $region42: #{tpu_custom_call.1} parent=5 // pred_check_branch
        %247 = sbr.rel (%p244) target = $region44
      $region43: #{tpu_custom_call.1} parent=5 // pred_region
        %s248 = ssub.s32 %s18, 1
        %s249 = sand.u32 %s31, 1
        %s250 = scalar_lea.sflag [#allocation3], %s249
        %s251 = sand.u32 %s31, 1
        %s252 = smul.addr %s251, 480
        %s253 = scalar_lea.vmem [#allocation2], %s252
        // Predicated region
        $region45: #{tpu_custom_call.1} parent=43 // pred_check
          %p254 = pneg %p44
        $region46: #{tpu_custom_call.1} parent=43 // pred_check_branch
          %256 = sbr.rel (%p254) target = $region48
        $region47: #{tpu_custom_call.1} parent=43 // pred_region
          %257 = dma.done %s250, 7680
        $region48: #{tpu_custom_call.1} parent=43 // pred_fallthru
          _
        %s258 = sand.u32 %s31, 1
        %s259 = scalar_lea.sflag [#allocation3], %s258
        %s260 = sand.u32 %s31, 1
        %s261 = smul.addr %s260, 480
        %s262 = scalar_lea.vmem [#allocation2], %s261
        %p263 = pneg %p44
        %p264 = pneg %p41
        %s265 = smul.u32 30, %s23
        %p266 = scmp.lt.s32.totalorder %s265, 59
        %s267 = scalar_select %p266, %s265, 59
        %s268 = smul.addr %s267, 8
        %s269 = scalar_lea.vmem %s1, %s268
        %p270 = pneg %p70
        %p271 = pneg %p67
        %p272 = pneg %p91
        %p273 = pneg %p88
        %p274 = pneg %p112
        %p275 = pneg %p109
        %p276 = pneg %p133
        %p277 = pneg %p130
        %p278 = pneg %p154
        %p279 = pneg %p151
        %p280 = pneg %p180
        %p281 = pneg %p177
        %s282 = sand.u32 %s167, 1
        %s283 = scalar_lea.sflag [#allocation4], %s282
        %s284 = sand.u32 %s167, 1
        %s285 = smul.addr %s284, 240
        %s286 = scalar_lea.vmem [#allocation5], %s285
        %s287 = smul.u32 30, %s23
        %s288 = smul.u32 30, %s23
        %p289 = scmp.lt.s32.totalorder %s288, 59
        %s290 = scalar_select %p289, %s288, 59
        %s291 = smul.addr %s290, 8
        %s292 = scalar_lea.vmem %s1, %s291
        %s293 = smul.u32 30, %s23
        %s294 = smul.u32 30, %s23
        %v295 = vld [vmem:[%s5] sm:$0xff]
        %v296 = vld [vmem:[%s5 + $0x8] sm:$0xff]
        %v297 = vld [vmem:[%s253] sm:$0xff]
        %v298 = vld [vmem:[%s253 + $0x8] sm:$0xff]
        %v299 = vld [vmem:[%s253 + $0x10] sm:$0xff]
        %v300 = vld [vmem:[%s253 + $0x18] sm:$0xff]
        %v301 = vld [vmem:[%s253 + $0x20] sm:$0xff]
        %v302 = vld [vmem:[%s253 + $0x28] sm:$0xff]
        %v303 = vld [vmem:[%s253 + $0x30] sm:$0xff]
        %v304 = vld [vmem:[%s253 + $0x38] sm:$0xff]
        %v305 = vld [vmem:[%s253 + $0x40] sm:$0xff]
        %v306 = vld [vmem:[%s253 + $0x48] sm:$0xff]
        %v307 = vld [vmem:[%s253 + $0x50] sm:$0xff]
        %v308 = vld [vmem:[%s253 + $0x58] sm:$0xff]
        %v309 = vld [vmem:[%s253 + $0x60] sm:$0xff]
        %v310 = vld [vmem:[%s253 + $0x68] sm:$0xff]
        %v311 = vld [vmem:[%s253 + $0x70] sm:$0xff]
        %v312 = vld [vmem:[%s253 + $0x78] sm:$0xff]
        %v313 = vld [vmem:[%s253 + $0x80] sm:$0xff]
        %v314 = vld [vmem:[%s253 + $0x88] sm:$0xff]
        %v315 = vld [vmem:[%s253 + $0x90] sm:$0xff]
        %v316 = vld [vmem:[%s253 + $0x98] sm:$0xff]
        %v317 = vld [vmem:[%s253 + $0xa0] sm:$0xff]
        %v318 = vld [vmem:[%s253 + $0xa8] sm:$0xff]
        %v319 = vld [vmem:[%s253 + $0xb0] sm:$0xff]
        %v320 = vld [vmem:[%s253 + $0xb8] sm:$0xff]
        %v321 = vld [vmem:[%s253 + $0xc0] sm:$0xff]
        %v322 = vld [vmem:[%s253 + $0xc8] sm:$0xff]
        %v323 = vld [vmem:[%s253 + $0xd0] sm:$0xff]
        %v324 = vld [vmem:[%s253 + $0xd8] sm:$0xff]
        %v325 = vld [vmem:[%s253 + $0xe0] sm:$0xff]
        %v326 = vld [vmem:[%s253 + $0xe8] sm:$0xff]
        %v327 = vld [vmem:[%s253 + $0xf0] sm:$0xff]
        %v328 = vld [vmem:[%s253 + $0xf8] sm:$0xff]
        %v329 = vld [vmem:[%s253 + $0x100] sm:$0xff]
        %v330 = vld [vmem:[%s253 + $0x108] sm:$0xff]
        %v331 = vld [vmem:[%s253 + $0x110] sm:$0xff]
        %v332 = vld [vmem:[%s253 + $0x118] sm:$0xff]
        %v333 = vld [vmem:[%s253 + $0x120] sm:$0xff]
        %v334 = vld [vmem:[%s253 + $0x128] sm:$0xff]
        %v335 = vld [vmem:[%s253 + $0x130] sm:$0xff]
        %v336 = vld [vmem:[%s253 + $0x138] sm:$0xff]
        %v337 = vld [vmem:[%s253 + $0x140] sm:$0xff]
        %v338 = vld [vmem:[%s253 + $0x148] sm:$0xff]
        %v339 = vld [vmem:[%s253 + $0x150] sm:$0xff]
        %v340 = vld [vmem:[%s253 + $0x158] sm:$0xff]
        %v341 = vld [vmem:[%s253 + $0x160] sm:$0xff]
        %v342 = vld [vmem:[%s253 + $0x168] sm:$0xff]
        %v343 = vld [vmem:[%s253 + $0x170] sm:$0xff]
        %v344 = vld [vmem:[%s253 + $0x178] sm:$0xff]
        %v345 = vld [vmem:[%s253 + $0x180] sm:$0xff]
        %v346 = vld [vmem:[%s253 + $0x188] sm:$0xff]
        %v347 = vld [vmem:[%s253 + $0x190] sm:$0xff]
        %v348 = vld [vmem:[%s253 + $0x198] sm:$0xff]
        %v349 = vld [vmem:[%s253 + $0x1a0] sm:$0xff]
        %v350 = vld [vmem:[%s253 + $0x1a8] sm:$0xff]
        %v351 = vld [vmem:[%s253 + $0x1b0] sm:$0xff]
        %v352 = vld [vmem:[%s253 + $0x1b8] sm:$0xff]
        %v353 = vld [vmem:[%s253 + $0x1c0] sm:$0xff]
        %v354 = vld [vmem:[%s253 + $0x1c8] sm:$0xff]
        %v355 = vld [vmem:[%s253 + $0x1d0] sm:$0xff]
        %v356 = vld [vmem:[%s253 + $0x1d8] sm:$0xff]
        %v357 = vld [vmem:[%s2] sm:$0xff]
        %v358 = vld [vmem:[%s2 + $0x8] sm:$0xff]
        %v359 = vld [vmem:[%s2 + $0x10] sm:$0xff]
        %v360 = vld [vmem:[%s2 + $0x18] sm:$0xff]
        %v361 = vld [vmem:[%s2 + $0x20] sm:$0xff]
        %v362 = vld [vmem:[%s2 + $0x28] sm:$0xff]
        %v363 = vld [vmem:[%s2 + $0x30] sm:$0xff]
        %v364 = vld [vmem:[%s2 + $0x38] sm:$0xff]
        %v365 = vld [vmem:[%s2 + $0x40] sm:$0xff]
        %v366 = vld [vmem:[%s2 + $0x48] sm:$0xff]
        %v367 = vld [vmem:[%s2 + $0x50] sm:$0xff]
        %v368 = vld [vmem:[%s2 + $0x58] sm:$0xff]
        %v369 = vld [vmem:[%s2 + $0x60] sm:$0xff]
        %v370 = vld [vmem:[%s2 + $0x68] sm:$0xff]
        %v371 = vld [vmem:[%s2 + $0x70] sm:$0xff]
        %v372 = vld [vmem:[%s2 + $0x78] sm:$0xff]
        %v373 = vld [vmem:[%s2 + $0x80] sm:$0xff]
        %v374 = vld [vmem:[%s2 + $0x88] sm:$0xff]
        %v375 = vld [vmem:[%s2 + $0x90] sm:$0xff]
        %v376 = vld [vmem:[%s2 + $0x98] sm:$0xff]
        %v377 = vld [vmem:[%s2 + $0xa0] sm:$0xff]
        %v378 = vld [vmem:[%s2 + $0xa8] sm:$0xff]
        %v379 = vld [vmem:[%s2 + $0xb0] sm:$0xff]
        %v380 = vld [vmem:[%s2 + $0xb8] sm:$0xff]
        %v381 = vld [vmem:[%s2 + $0xc0] sm:$0xff]
        %v382 = vld [vmem:[%s2 + $0xc8] sm:$0xff]
        %v383 = vld [vmem:[%s2 + $0xd0] sm:$0xff]
        %v384 = vld [vmem:[%s2 + $0xd8] sm:$0xff]
        %v385 = vld [vmem:[%s2 + $0xe0] sm:$0xff]
        %v386 = vld [vmem:[%s2 + $0xe8] sm:$0xff]
        %v387 = vld [vmem:[%s2 + $0xf0] sm:$0xff]
        %v388 = vld [vmem:[%s2 + $0xf8] sm:$0xff]
        %v389 = vlaneseq
        %v390 = vshrl.u32 %v389, 7
        %v391 = vsub.s32 0, %v390
        %v392 = vrot.slane %v295, %v391
        %393 = vmatprep.subr.mxu0 0.0
        %394 = vmatpush1.msra.mxu0 %v372
        %395 = vmatprep.subr.mxu0 0.0
        %396 = vmatpush1.msra.mxu0 %v371
        %397 = vmatprep.subr.mxu0 0.0
        %398 = vmatpush1.msra.mxu0 %v370
        %399 = vmatprep.subr.mxu0 0.0
        %400 = vmatpush1.msra.mxu0 %v369
        %401 = vmatprep.subr.mxu0 0.0
        %402 = vmatpush1.msra.mxu0 %v368
        %403 = vmatprep.subr.mxu0 0.0
        %404 = vmatpush1.msra.mxu0 %v367
        %405 = vmatprep.subr.mxu0 0.0
        %406 = vmatpush1.msra.mxu0 %v366
        %407 = vmatprep.subr.mxu0 0.0
        %408 = vmatpush1.msra.mxu0 %v365
        %409 = vmatprep.subr.mxu0 0.0
        %410 = vmatpush1.msra.mxu0 %v364
        %411 = vmatprep.subr.mxu0 0.0
        %412 = vmatpush1.msra.mxu0 %v363
        %413 = vmatprep.subr.mxu0 0.0
        %414 = vmatpush1.msra.mxu0 %v362
        %415 = vmatprep.subr.mxu0 0.0
        %416 = vmatpush1.msra.mxu0 %v361
        %417 = vmatprep.subr.mxu0 0.0
        %418 = vmatpush1.msra.mxu0 %v360
        %419 = vmatprep.subr.mxu0 0.0
        %420 = vmatpush1.msra.mxu0 %v359
        %421 = vmatprep.subr.mxu0 0.0
        %422 = vmatpush1.msra.mxu0 %v358
        %423 = vmatprep.subr.mxu0 0.0
        %424 = vmatpush1.msra.mxu0 %v357
        %425 = vmatprep.subr.mxu0 0.0
        %426 = vmatpush2.msra.mxu0 %v388
        %427 = vmatprep.subr.mxu0 0.0
        %428 = vmatpush2.msra.mxu0 %v387
        %429 = vmatprep.subr.mxu0 0.0
        %430 = vmatpush2.msra.mxu0 %v386
        %431 = vmatprep.subr.mxu0 0.0
        %432 = vmatpush2.msra.mxu0 %v385
        %433 = vmatprep.subr.mxu0 0.0
        %434 = vmatpush2.msra.mxu0 %v384
        %435 = vmatprep.subr.mxu0 0.0
        %436 = vmatpush2.msra.mxu0 %v383
        %437 = vmatprep.subr.mxu0 0.0
        %438 = vmatpush2.msra.mxu0 %v382
        %439 = vmatprep.subr.mxu0 0.0
        %440 = vmatpush2.msra.mxu0 %v381
        %441 = vmatprep.subr.mxu0 0.0
        %442 = vmatpush2.msra.mxu0 %v380
        %443 = vmatprep.subr.mxu0 0.0
        %444 = vmatpush2.msra.mxu0 %v379
        %445 = vmatprep.subr.mxu0 0.0
        %446 = vmatpush2.msra.mxu0 %v378
        %447 = vmatprep.subr.mxu0 0.0
        %448 = vmatpush2.msra.mxu0 %v377
        %449 = vmatprep.subr.mxu0 0.0
        %450 = vmatpush2.msra.mxu0 %v376
        %451 = vmatprep.subr.mxu0 0.0
        %452 = vmatpush2.msra.mxu0 %v375
        %453 = vmatprep.subr.mxu0 0.0
        %454 = vmatpush2.msra.mxu0 %v374
        %455 = vmatprep.subr.mxu0 0.0
        %456 = vmatpush2.msra.mxu0 %v373
        %457 = vmatprep.mubr.f32.mxu0 %v298
        %458 = vmatmul.mubr.f32.gmra.mxu0 %v297
        %v459 = vpop.f32.mrf.mxu0
        %v460 = vadd.f32 %v392, %v459
        %v461 = vpop.f32.mrf.mxu0
        %462 = vmatprep.mubr.f32.mxu0 %v300
        %463 = vmatmul.mubr.f32.gmra.mxu0 %v299
        %v464 = vpop.f32.mrf.mxu0
        %v465 = vadd.f32 %v392, %v464
        %v466 = vpop.f32.mrf.mxu0
        %467 = vmatprep.mubr.f32.mxu0 %v302
        %468 = vmatmul.mubr.f32.gmra.mxu0 %v301
        %v469 = vpop.f32.mrf.mxu0
        %v470 = vadd.f32 %v392, %v469
        %v471 = vpop.f32.mrf.mxu0
        %472 = vmatprep.mubr.f32.mxu0 %v304
        %473 = vmatmul.mubr.f32.gmra.mxu0 %v303
        %v474 = vpop.f32.mrf.mxu0
        %v475 = vadd.f32 %v392, %v474
        %v476 = vpop.f32.mrf.mxu0
        %477 = vmatprep.mubr.f32.mxu0 %v306
        %478 = vmatmul.mubr.f32.gmra.mxu0 %v305
        %v479 = vpop.f32.mrf.mxu0
        %v480 = vadd.f32 %v392, %v479
        %v481 = vpop.f32.mrf.mxu0
        %482 = vmatprep.mubr.f32.mxu0 %v308
        %483 = vmatmul.mubr.f32.gmra.mxu0 %v307
        %v484 = vpop.f32.mrf.mxu0
        %v485 = vadd.f32 %v392, %v484
        %v486 = vpop.f32.mrf.mxu0
        %487 = vmatprep.mubr.f32.mxu0 %v310
        %488 = vmatmul.mubr.f32.gmra.mxu0 %v309
        %v489 = vpop.f32.mrf.mxu0
        %v490 = vadd.f32 %v392, %v489
        %v491 = vpop.f32.mrf.mxu0
        %492 = vmatprep.mubr.f32.mxu0 %v312
        %493 = vmatmul.mubr.f32.gmra.mxu0 %v311
        %v494 = vpop.f32.mrf.mxu0
        %v495 = vadd.f32 %v392, %v494
        %v496 = vpop.f32.mrf.mxu0
        %497 = vmatprep.mubr.f32.mxu0 %v314
        %498 = vmatmul.mubr.f32.gmra.mxu0 %v313
        %v499 = vpop.f32.mrf.mxu0
        %v500 = vadd.f32 %v392, %v499
        %v501 = vpop.f32.mrf.mxu0
        %502 = vmatprep.mubr.f32.mxu0 %v316
        %503 = vmatmul.mubr.f32.gmra.mxu0 %v315
        %v504 = vpop.f32.mrf.mxu0
        %v505 = vadd.f32 %v392, %v504
        %v506 = vpop.f32.mrf.mxu0
        %507 = vmatprep.mubr.f32.mxu0 %v318
        %508 = vmatmul.mubr.f32.gmra.mxu0 %v317
        %v509 = vpop.f32.mrf.mxu0
        %v510 = vadd.f32 %v392, %v509
        %v511 = vpop.f32.mrf.mxu0
        %512 = vmatprep.mubr.f32.mxu0 %v320
        %513 = vmatmul.mubr.f32.gmra.mxu0 %v319
        %v514 = vpop.f32.mrf.mxu0
        %v515 = vadd.f32 %v392, %v514
        %v516 = vpop.f32.mrf.mxu0
        %517 = vmatprep.mubr.f32.mxu0 %v322
        %518 = vmatmul.mubr.f32.gmra.mxu0 %v321
        %v519 = vpop.f32.mrf.mxu0
        %v520 = vadd.f32 %v392, %v519
        %v521 = vpop.f32.mrf.mxu0
        %522 = vmatprep.mubr.f32.mxu0 %v324
        %523 = vmatmul.mubr.f32.gmra.mxu0 %v323
        %v524 = vpop.f32.mrf.mxu0
        %v525 = vadd.f32 %v392, %v524
        %v526 = vpop.f32.mrf.mxu0
        %527 = vmatprep.mubr.f32.mxu0 %v326
        %528 = vmatmul.mubr.f32.gmra.mxu0 %v325
        %v529 = vpop.f32.mrf.mxu0
        %v530 = vadd.f32 %v392, %v529
        %v531 = vpop.f32.mrf.mxu0
        %532 = vmatprep.mubr.f32.mxu0 %v328
        %533 = vmatmul.mubr.f32.gmra.mxu0 %v327
        %v534 = vpop.f32.mrf.mxu0
        %v535 = vadd.f32 %v392, %v534
        %v536 = vpop.f32.mrf.mxu0
        %537 = vmatprep.mubr.f32.mxu0 %v330
        %538 = vmatmul.mubr.f32.gmra.mxu0 %v329
        %v539 = vpop.f32.mrf.mxu0
        %v540 = vadd.f32 %v392, %v539
        %v541 = vpop.f32.mrf.mxu0
        %542 = vmatprep.mubr.f32.mxu0 %v332
        %543 = vmatmul.mubr.f32.gmra.mxu0 %v331
        %v544 = vpop.f32.mrf.mxu0
        %v545 = vadd.f32 %v392, %v544
        %v546 = vpop.f32.mrf.mxu0
        %547 = vmatprep.mubr.f32.mxu0 %v334
        %548 = vmatmul.mubr.f32.gmra.mxu0 %v333
        %v549 = vpop.f32.mrf.mxu0
        %v550 = vadd.f32 %v392, %v549
        %v551 = vpop.f32.mrf.mxu0
        %552 = vmatprep.mubr.f32.mxu0 %v336
        %553 = vmatmul.mubr.f32.gmra.mxu0 %v335
        %v554 = vpop.f32.mrf.mxu0
        %v555 = vadd.f32 %v392, %v554
        %v556 = vpop.f32.mrf.mxu0
        %557 = vmatprep.mubr.f32.mxu0 %v338
        %558 = vmatmul.mubr.f32.gmra.mxu0 %v337
        %v559 = vpop.f32.mrf.mxu0
        %v560 = vadd.f32 %v392, %v559
        %v561 = vpop.f32.mrf.mxu0
        %562 = vmatprep.mubr.f32.mxu0 %v340
        %563 = vmatmul.mubr.f32.gmra.mxu0 %v339
        %v564 = vpop.f32.mrf.mxu0
        %v565 = vadd.f32 %v392, %v564
        %v566 = vpop.f32.mrf.mxu0
        %567 = vmatprep.mubr.f32.mxu0 %v342
        %568 = vmatmul.mubr.f32.gmra.mxu0 %v341
        %v569 = vpop.f32.mrf.mxu0
        %v570 = vadd.f32 %v392, %v569
        %v571 = vpop.f32.mrf.mxu0
        %572 = vmatprep.mubr.f32.mxu0 %v344
        %573 = vmatmul.mubr.f32.gmra.mxu0 %v343
        %v574 = vpop.f32.mrf.mxu0
        %v575 = vadd.f32 %v392, %v574
        %v576 = vpop.f32.mrf.mxu0
        %577 = vmatprep.mubr.f32.mxu0 %v346
        %578 = vmatmul.mubr.f32.gmra.mxu0 %v345
        %v579 = vpop.f32.mrf.mxu0
        %v580 = vadd.f32 %v392, %v579
        %v581 = vpop.f32.mrf.mxu0
        %582 = vmatprep.mubr.f32.mxu0 %v348
        %583 = vmatmul.mubr.f32.gmra.mxu0 %v347
        %v584 = vpop.f32.mrf.mxu0
        %v585 = vadd.f32 %v392, %v584
        %v586 = vpop.f32.mrf.mxu0
        %587 = vmatprep.mubr.f32.mxu0 %v350
        %588 = vmatmul.mubr.f32.gmra.mxu0 %v349
        %v589 = vpop.f32.mrf.mxu0
        %v590 = vadd.f32 %v392, %v589
        %v591 = vpop.f32.mrf.mxu0
        %592 = vmatprep.mubr.f32.mxu0 %v352
        %593 = vmatmul.mubr.f32.gmra.mxu0 %v351
        %v594 = vpop.f32.mrf.mxu0
        %v595 = vadd.f32 %v392, %v594
        %v596 = vpop.f32.mrf.mxu0
        %597 = vmatprep.mubr.f32.mxu0 %v354
        %598 = vmatmul.mubr.f32.gmra.mxu0 %v353
        %v599 = vpop.f32.mrf.mxu0
        %v600 = vadd.f32 %v392, %v599
        %v601 = vpop.f32.mrf.mxu0
        %602 = vmatprep.mubr.f32.mxu0 %v356
        %603 = vmatmul.mubr.f32.gmra.mxu0 %v355
        %v604 = vpop.f32.mrf.mxu0
        %v605 = vadd.f32 %v392, %v604
        %v606 = vpop.f32.mrf.mxu0
        %607 = vdwg.mxu0
        %608 = vadd.xlane.f32.xlu0 %v460
        %v609 = vpop.xlane.xlu0 %608
        %610 = vadd.xlane.f32.xlu0 %v465
        %v611 = vpop.xlane.xlu0 %610
        %612 = vadd.xlane.f32.xlu0 %v470
        %v613 = vpop.xlane.xlu0 %612
        %614 = vadd.xlane.f32.xlu0 %v475
        %v615 = vpop.xlane.xlu0 %614
        %616 = vadd.xlane.f32.xlu0 %v480
        %v617 = vpop.xlane.xlu0 %616
        %618 = vadd.xlane.f32.xlu0 %v485
        %v619 = vpop.xlane.xlu0 %618
        %620 = vadd.xlane.f32.xlu0 %v490
        %v621 = vpop.xlane.xlu0 %620
        %622 = vadd.xlane.f32.xlu0 %v495
        %v623 = vpop.xlane.xlu0 %622
        %624 = vadd.xlane.f32.xlu0 %v500
        %v625 = vpop.xlane.xlu0 %624
        %626 = vadd.xlane.f32.xlu0 %v505
        %v627 = vpop.xlane.xlu0 %626
        %628 = vadd.xlane.f32.xlu0 %v510
        %v629 = vpop.xlane.xlu0 %628
        %630 = vadd.xlane.f32.xlu0 %v515
        %v631 = vpop.xlane.xlu0 %630
        %632 = vadd.xlane.f32.xlu0 %v520
        %v633 = vpop.xlane.xlu0 %632
        %634 = vadd.xlane.f32.xlu0 %v525
        %v635 = vpop.xlane.xlu0 %634
        %636 = vadd.xlane.f32.xlu0 %v530
        %v637 = vpop.xlane.xlu0 %636
        %638 = vadd.xlane.f32.xlu0 %v535
        %v639 = vpop.xlane.xlu0 %638
        %640 = vadd.xlane.f32.xlu0 %v540
        %v641 = vpop.xlane.xlu0 %640
        %642 = vadd.xlane.f32.xlu0 %v545
        %v643 = vpop.xlane.xlu0 %642
        %644 = vadd.xlane.f32.xlu0 %v550
        %v645 = vpop.xlane.xlu0 %644
        %646 = vadd.xlane.f32.xlu0 %v555
        %v647 = vpop.xlane.xlu0 %646
        %648 = vadd.xlane.f32.xlu0 %v560
        %v649 = vpop.xlane.xlu0 %648
        %650 = vadd.xlane.f32.xlu0 %v565
        %v651 = vpop.xlane.xlu0 %650
        %652 = vadd.xlane.f32.xlu0 %v570
        %v653 = vpop.xlane.xlu0 %652
        %654 = vadd.xlane.f32.xlu0 %v575
        %v655 = vpop.xlane.xlu0 %654
        %656 = vadd.xlane.f32.xlu0 %v580
        %v657 = vpop.xlane.xlu0 %656
        %658 = vadd.xlane.f32.xlu0 %v585
        %v659 = vpop.xlane.xlu0 %658
        %660 = vadd.xlane.f32.xlu0 %v590
        %v661 = vpop.xlane.xlu0 %660
        %662 = vadd.xlane.f32.xlu0 %v595
        %v663 = vpop.xlane.xlu0 %662
        %664 = vadd.xlane.f32.xlu0 %v600
        %v665 = vpop.xlane.xlu0 %664
        %666 = vadd.xlane.f32.xlu0 %v605
        %v667 = vpop.xlane.xlu0 %666
        %v668 = vrcp.pop 128.0
        %v669 = vmul.f32 %v609, %v668
        %v670 = vmul.f32 %v611, %v668
        %v671 = vmul.f32 %v613, %v668
        %v672 = vmul.f32 %v615, %v668
        %v673 = vmul.f32 %v617, %v668
        %v674 = vmul.f32 %v619, %v668
        %v675 = vmul.f32 %v621, %v668
        %v676 = vmul.f32 %v623, %v668
        %v677 = vmul.f32 %v625, %v668
        %v678 = vmul.f32 %v627, %v668
        %v679 = vmul.f32 %v629, %v668
        %v680 = vmul.f32 %v631, %v668
        %v681 = vmul.f32 %v633, %v668
        %v682 = vmul.f32 %v635, %v668
        %v683 = vmul.f32 %v637, %v668
        %v684 = vmul.f32 %v639, %v668
        %v685 = vmul.f32 %v641, %v668
        %v686 = vmul.f32 %v643, %v668
        %v687 = vmul.f32 %v645, %v668
        %v688 = vmul.f32 %v647, %v668
        %v689 = vmul.f32 %v649, %v668
        %v690 = vmul.f32 %v651, %v668
        %v691 = vmul.f32 %v653, %v668
        %v692 = vmul.f32 %v655, %v668
        %v693 = vmul.f32 %v657, %v668
        %v694 = vmul.f32 %v659, %v668
        %v695 = vmul.f32 %v661, %v668
        %v696 = vmul.f32 %v663, %v668
        %v697 = vmul.f32 %v665, %v668
        %v698 = vmul.f32 %v667, %v668
        %v699 = vsub.f32 %v460, %v669
        %v700 = vsub.f32 %v465, %v670
        %v701 = vsub.f32 %v470, %v671
        %v702 = vsub.f32 %v475, %v672
        %v703 = vsub.f32 %v480, %v673
        %v704 = vsub.f32 %v485, %v674
        %v705 = vsub.f32 %v490, %v675
        %v706 = vsub.f32 %v495, %v676
        %v707 = vsub.f32 %v500, %v677
        %v708 = vsub.f32 %v505, %v678
        %v709 = vsub.f32 %v510, %v679
        %v710 = vsub.f32 %v515, %v680
        %v711 = vsub.f32 %v520, %v681
        %v712 = vsub.f32 %v525, %v682
        %v713 = vsub.f32 %v530, %v683
        %v714 = vsub.f32 %v535, %v684
        %v715 = vsub.f32 %v540, %v685
        %v716 = vsub.f32 %v545, %v686
        %v717 = vsub.f32 %v550, %v687
        %v718 = vsub.f32 %v555, %v688
        %v719 = vsub.f32 %v560, %v689
        %v720 = vsub.f32 %v565, %v690
        %v721 = vsub.f32 %v570, %v691
        %v722 = vsub.f32 %v575, %v692
        %v723 = vsub.f32 %v580, %v693
        %v724 = vsub.f32 %v585, %v694
        %v725 = vsub.f32 %v590, %v695
        %v726 = vsub.f32 %v595, %v696
        %v727 = vsub.f32 %v600, %v697
        %v728 = vsub.f32 %v605, %v698
        %v729 = vmul.f32 %v699, %v699
        %v730 = vmul.f32 %v700, %v700
        %v731 = vmul.f32 %v701, %v701
        %v732 = vmul.f32 %v702, %v702
        %v733 = vmul.f32 %v703, %v703
        %v734 = vmul.f32 %v704, %v704
        %v735 = vmul.f32 %v705, %v705
        %v736 = vmul.f32 %v706, %v706
        %v737 = vmul.f32 %v707, %v707
        %v738 = vmul.f32 %v708, %v708
        %v739 = vmul.f32 %v709, %v709
        %v740 = vmul.f32 %v710, %v710
        %v741 = vmul.f32 %v711, %v711
        %v742 = vmul.f32 %v712, %v712
        %v743 = vmul.f32 %v713, %v713
        %v744 = vmul.f32 %v714, %v714
        %v745 = vmul.f32 %v715, %v715
        %v746 = vmul.f32 %v716, %v716
        %v747 = vmul.f32 %v717, %v717
        %v748 = vmul.f32 %v718, %v718
        %v749 = vmul.f32 %v719, %v719
        %v750 = vmul.f32 %v720, %v720
        %v751 = vmul.f32 %v721, %v721
        %v752 = vmul.f32 %v722, %v722
        %v753 = vmul.f32 %v723, %v723
        %v754 = vmul.f32 %v724, %v724
        %v755 = vmul.f32 %v725, %v725
        %v756 = vmul.f32 %v726, %v726
        %v757 = vmul.f32 %v727, %v727
        %v758 = vmul.f32 %v728, %v728
        %759 = vadd.xlane.f32.xlu0 %v729
        %v760 = vpop.xlane.xlu0 %759
        %761 = vadd.xlane.f32.xlu0 %v730
        %v762 = vpop.xlane.xlu0 %761
        %763 = vadd.xlane.f32.xlu0 %v731
        %v764 = vpop.xlane.xlu0 %763
        %765 = vadd.xlane.f32.xlu0 %v732
        %v766 = vpop.xlane.xlu0 %765
        %767 = vadd.xlane.f32.xlu0 %v733
        %v768 = vpop.xlane.xlu0 %767
        %769 = vadd.xlane.f32.xlu0 %v734
        %v770 = vpop.xlane.xlu0 %769
        %771 = vadd.xlane.f32.xlu0 %v735
        %v772 = vpop.xlane.xlu0 %771
        %773 = vadd.xlane.f32.xlu0 %v736
        %v774 = vpop.xlane.xlu0 %773
        %775 = vadd.xlane.f32.xlu0 %v737
        %v776 = vpop.xlane.xlu0 %775
        %777 = vadd.xlane.f32.xlu0 %v738
        %v778 = vpop.xlane.xlu0 %777
        %779 = vadd.xlane.f32.xlu0 %v739
        %v780 = vpop.xlane.xlu0 %779
        %781 = vadd.xlane.f32.xlu0 %v740
        %v782 = vpop.xlane.xlu0 %781
        %783 = vadd.xlane.f32.xlu0 %v741
        %v784 = vpop.xlane.xlu0 %783
        %785 = vadd.xlane.f32.xlu0 %v742
        %v786 = vpop.xlane.xlu0 %785
        %787 = vadd.xlane.f32.xlu0 %v743
        %v788 = vpop.xlane.xlu0 %787
        %789 = vadd.xlane.f32.xlu0 %v744
        %v790 = vpop.xlane.xlu0 %789
        %791 = vadd.xlane.f32.xlu0 %v745
        %v792 = vpop.xlane.xlu0 %791
        %793 = vadd.xlane.f32.xlu0 %v746
        %v794 = vpop.xlane.xlu0 %793
        %795 = vadd.xlane.f32.xlu0 %v747
        %v796 = vpop.xlane.xlu0 %795
        %797 = vadd.xlane.f32.xlu0 %v748
        %v798 = vpop.xlane.xlu0 %797
        %799 = vadd.xlane.f32.xlu0 %v749
        %v800 = vpop.xlane.xlu0 %799
        %801 = vadd.xlane.f32.xlu0 %v750
        %v802 = vpop.xlane.xlu0 %801
        %803 = vadd.xlane.f32.xlu0 %v751
        %v804 = vpop.xlane.xlu0 %803
        %805 = vadd.xlane.f32.xlu0 %v752
        %v806 = vpop.xlane.xlu0 %805
        %807 = vadd.xlane.f32.xlu0 %v753
        %v808 = vpop.xlane.xlu0 %807
        %809 = vadd.xlane.f32.xlu0 %v754
        %v810 = vpop.xlane.xlu0 %809
        %811 = vadd.xlane.f32.xlu0 %v755
        %v812 = vpop.xlane.xlu0 %811
        %813 = vadd.xlane.f32.xlu0 %v756
        %v814 = vpop.xlane.xlu0 %813
        %815 = vadd.xlane.f32.xlu0 %v757
        %v816 = vpop.xlane.xlu0 %815
        %817 = vadd.xlane.f32.xlu0 %v758
        %v818 = vpop.xlane.xlu0 %817
        %v819 = vmul.f32 %v760, %v668
        %v820 = vmul.f32 %v762, %v668
        %v821 = vmul.f32 %v764, %v668
        %v822 = vmul.f32 %v766, %v668
        %v823 = vmul.f32 %v768, %v668
        %v824 = vmul.f32 %v770, %v668
        %v825 = vmul.f32 %v772, %v668
        %v826 = vmul.f32 %v774, %v668
        %v827 = vmul.f32 %v776, %v668
        %v828 = vmul.f32 %v778, %v668
        %v829 = vmul.f32 %v780, %v668
        %v830 = vmul.f32 %v782, %v668
        %v831 = vmul.f32 %v784, %v668
        %v832 = vmul.f32 %v786, %v668
        %v833 = vmul.f32 %v788, %v668
        %v834 = vmul.f32 %v790, %v668
        %v835 = vmul.f32 %v792, %v668
        %v836 = vmul.f32 %v794, %v668
        %v837 = vmul.f32 %v796, %v668
        %v838 = vmul.f32 %v798, %v668
        %v839 = vmul.f32 %v800, %v668
        %v840 = vmul.f32 %v802, %v668
        %v841 = vmul.f32 %v804, %v668
        %v842 = vmul.f32 %v806, %v668
        %v843 = vmul.f32 %v808, %v668
        %v844 = vmul.f32 %v810, %v668
        %v845 = vmul.f32 %v812, %v668
        %v846 = vmul.f32 %v814, %v668
        %v847 = vmul.f32 %v816, %v668
        %v848 = vmul.f32 %v818, %v668
        %v849 = vadd.f32 %v819, 1e-12
        %v850 = vadd.f32 %v820, 1e-12
        %v851 = vadd.f32 %v821, 1e-12
        %v852 = vadd.f32 %v822, 1e-12
        %v853 = vadd.f32 %v823, 1e-12
        %v854 = vadd.f32 %v824, 1e-12
        %v855 = vadd.f32 %v825, 1e-12
        %v856 = vadd.f32 %v826, 1e-12
        %v857 = vadd.f32 %v827, 1e-12
        %v858 = vadd.f32 %v828, 1e-12
        %v859 = vadd.f32 %v829, 1e-12
        %v860 = vadd.f32 %v830, 1e-12
        %v861 = vadd.f32 %v831, 1e-12
        %v862 = vadd.f32 %v832, 1e-12
        %v863 = vadd.f32 %v833, 1e-12
        %v864 = vadd.f32 %v834, 1e-12
        %v865 = vadd.f32 %v835, 1e-12
        %v866 = vadd.f32 %v836, 1e-12
        %v867 = vadd.f32 %v837, 1e-12
        %v868 = vadd.f32 %v838, 1e-12
        %v869 = vadd.f32 %v839, 1e-12
        %v870 = vadd.f32 %v840, 1e-12
        %v871 = vadd.f32 %v841, 1e-12
        %v872 = vadd.f32 %v842, 1e-12
        %v873 = vadd.f32 %v843, 1e-12
        %v874 = vadd.f32 %v844, 1e-12
        %v875 = vadd.f32 %v845, 1e-12
        %v876 = vadd.f32 %v846, 1e-12
        %v877 = vadd.f32 %v847, 1e-12
        %v878 = vadd.f32 %v848, 1e-12
        %v879 = vrsqrt.pop %v849
        %v880 = vrsqrt.pop %v850
        %v881 = vrsqrt.pop %v851
        %v882 = vrsqrt.pop %v852
        %v883 = vrsqrt.pop %v853
        %v884 = vrsqrt.pop %v854
        %v885 = vrsqrt.pop %v855
        %v886 = vrsqrt.pop %v856
        %v887 = vrsqrt.pop %v857
        %v888 = vrsqrt.pop %v858
        %v889 = vrsqrt.pop %v859
        %v890 = vrsqrt.pop %v860
        %v891 = vrsqrt.pop %v861
        %v892 = vrsqrt.pop %v862
        %v893 = vrsqrt.pop %v863
        %v894 = vrsqrt.pop %v864
        %v895 = vrsqrt.pop %v865
        %v896 = vrsqrt.pop %v866
        %v897 = vrsqrt.pop %v867
        %v898 = vrsqrt.pop %v868
        %v899 = vrsqrt.pop %v869
        %v900 = vrsqrt.pop %v870
        %v901 = vrsqrt.pop %v871
        %v902 = vrsqrt.pop %v872
        %v903 = vrsqrt.pop %v873
        %v904 = vrsqrt.pop %v874
        %v905 = vrsqrt.pop %v875
        %v906 = vrsqrt.pop %v876
        %v907 = vrsqrt.pop %v877
        %v908 = vrsqrt.pop %v878
        %v909 = vmul.f32 %v699, %v879
        %v910 = vmul.f32 %v700, %v880
        %v911 = vmul.f32 %v701, %v881
        %v912 = vmul.f32 %v702, %v882
        %v913 = vmul.f32 %v703, %v883
        %v914 = vmul.f32 %v704, %v884
        %v915 = vmul.f32 %v705, %v885
        %v916 = vmul.f32 %v706, %v886
        %v917 = vmul.f32 %v707, %v887
        %v918 = vmul.f32 %v708, %v888
        %v919 = vmul.f32 %v709, %v889
        %v920 = vmul.f32 %v710, %v890
        %v921 = vmul.f32 %v711, %v891
        %v922 = vmul.f32 %v712, %v892
        %v923 = vmul.f32 %v713, %v893
        %v924 = vmul.f32 %v714, %v894
        %v925 = vmul.f32 %v715, %v895
        %v926 = vmul.f32 %v716, %v896
        %v927 = vmul.f32 %v717, %v897
        %v928 = vmul.f32 %v718, %v898
        %v929 = vmul.f32 %v719, %v899
        %v930 = vmul.f32 %v720, %v900
        %v931 = vmul.f32 %v721, %v901
        %v932 = vmul.f32 %v722, %v902
        %v933 = vmul.f32 %v723, %v903
        %v934 = vmul.f32 %v724, %v904
        %v935 = vmul.f32 %v725, %v905
        %v936 = vmul.f32 %v726, %v906
        %v937 = vmul.f32 %v727, %v907
        %v938 = vmul.f32 %v728, %v908
        %v939 = vlaneseq
        %v940 = vshrl.u32 %v939, 7
        %v941 = vsub.s32 1, %v940
        %v942 = vrot.slane %v295, %v941
        %v943 = vmul.f32 %v909, %v942
        %v944 = vmul.f32 %v910, %v942
        %v945 = vmul.f32 %v911, %v942
        %v946 = vmul.f32 %v912, %v942
        %v947 = vmul.f32 %v913, %v942
        %v948 = vmul.f32 %v914, %v942
        %v949 = vmul.f32 %v915, %v942
        %v950 = vmul.f32 %v916, %v942
        %v951 = vmul.f32 %v917, %v942
        %v952 = vmul.f32 %v918, %v942
        %v953 = vmul.f32 %v919, %v942
        %v954 = vmul.f32 %v920, %v942
        %v955 = vmul.f32 %v921, %v942
        %v956 = vmul.f32 %v922, %v942
        %v957 = vmul.f32 %v923, %v942
        %v958 = vmul.f32 %v924, %v942
        %v959 = vmul.f32 %v925, %v942
        %v960 = vmul.f32 %v926, %v942
        %v961 = vmul.f32 %v927, %v942
        %v962 = vmul.f32 %v928, %v942
        %v963 = vmul.f32 %v929, %v942
        %v964 = vmul.f32 %v930, %v942
        %v965 = vmul.f32 %v931, %v942
        %v966 = vmul.f32 %v932, %v942
        %v967 = vmul.f32 %v933, %v942
        %v968 = vmul.f32 %v934, %v942
        %v969 = vmul.f32 %v935, %v942
        %v970 = vmul.f32 %v936, %v942
        %v971 = vmul.f32 %v937, %v942
        %v972 = vmul.f32 %v938, %v942
        %v973 = vlaneseq
        %v974 = vshrl.u32 %v973, 7
        %v975 = vsub.s32 2, %v974
        %v976 = vrot.slane %v295, %v975
        %v977 = vadd.f32 %v943, %v976
        %v978 = vadd.f32 %v944, %v976
        %v979 = vadd.f32 %v945, %v976
        %v980 = vadd.f32 %v946, %v976
        %v981 = vadd.f32 %v947, %v976
        %v982 = vadd.f32 %v948, %v976
        %v983 = vadd.f32 %v949, %v976
        %v984 = vadd.f32 %v950, %v976
        %v985 = vadd.f32 %v951, %v976
        %v986 = vadd.f32 %v952, %v976
        %v987 = vadd.f32 %v953, %v976
        %v988 = vadd.f32 %v954, %v976
        %v989 = vadd.f32 %v955, %v976
        %v990 = vadd.f32 %v956, %v976
        %v991 = vadd.f32 %v957, %v976
        %v992 = vadd.f32 %v958, %v976
        %v993 = vadd.f32 %v959, %v976
        %v994 = vadd.f32 %v960, %v976
        %v995 = vadd.f32 %v961, %v976
        %v996 = vadd.f32 %v962, %v976
        %v997 = vadd.f32 %v963, %v976
        %v998 = vadd.f32 %v964, %v976
        %v999 = vadd.f32 %v965, %v976
        %v1000 = vadd.f32 %v966, %v976
        %v1001 = vadd.f32 %v967, %v976
        %v1002 = vadd.f32 %v968, %v976
        %v1003 = vadd.f32 %v969, %v976
        %v1004 = vadd.f32 %v970, %v976
        %v1005 = vadd.f32 %v971, %v976
        %v1006 = vadd.f32 %v972, %v976
        %v1007 = vld [vmem:[%s292] sm:$0xff]
        %v1008 = vld [vmem:[%s292 + $0x8] sm:$0xff]
        %v1009 = vld [vmem:[%s292 + $0x10] sm:$0xff]
        %v1010 = vld [vmem:[%s292 + $0x18] sm:$0xff]
        %v1011 = vld [vmem:[%s292 + $0x20] sm:$0xff]
        %v1012 = vld [vmem:[%s292 + $0x28] sm:$0xff]
        %v1013 = vld [vmem:[%s292 + $0x30] sm:$0xff]
        %v1014 = vld [vmem:[%s292 + $0x38] sm:$0xff]
        %v1015 = vld [vmem:[%s292 + $0x40] sm:$0xff]
        %v1016 = vld [vmem:[%s292 + $0x48] sm:$0xff]
        %v1017 = vld [vmem:[%s292 + $0x50] sm:$0xff]
        %v1018 = vld [vmem:[%s292 + $0x58] sm:$0xff]
        %v1019 = vld [vmem:[%s292 + $0x60] sm:$0xff]
        %v1020 = vld [vmem:[%s292 + $0x68] sm:$0xff]
        %v1021 = vld [vmem:[%s292 + $0x70] sm:$0xff]
        %v1022 = vld [vmem:[%s292 + $0x78] sm:$0xff]
        %v1023 = vld [vmem:[%s292 + $0x80] sm:$0xff]
        %v1024 = vld [vmem:[%s292 + $0x88] sm:$0xff]
        %v1025 = vld [vmem:[%s292 + $0x90] sm:$0xff]
        %v1026 = vld [vmem:[%s292 + $0x98] sm:$0xff]
        %v1027 = vld [vmem:[%s292 + $0xa0] sm:$0xff]
        %v1028 = vld [vmem:[%s292 + $0xa8] sm:$0xff]
        %v1029 = vld [vmem:[%s292 + $0xb0] sm:$0xff]
        %v1030 = vld [vmem:[%s292 + $0xb8] sm:$0xff]
        %v1031 = vld [vmem:[%s292 + $0xc0] sm:$0xff]
        %v1032 = vld [vmem:[%s292 + $0xc8] sm:$0xff]
        %v1033 = vld [vmem:[%s292 + $0xd0] sm:$0xff]
        %v1034 = vld [vmem:[%s292 + $0xd8] sm:$0xff]
        %v1035 = vld [vmem:[%s292 + $0xe0] sm:$0xff]
        %v1036 = vld [vmem:[%s292 + $0xe8] sm:$0xff]
        %v1037 = vld [vmem:[%s3] sm:$0xff]
        %v1038 = vlaneseq
        %v1039 = vshrl.u32 %v1038, 7
        %v1040 = vsub.s32 3, %v1039
        %v1041 = vrot.slane %v295, %v1040
        %vm1042 = vcmask 64512
        %v1044 = vsel %vm1042, %v1007, 0
        %v1047 = vsel %vm1042, %v1008, 0
        %v1050 = vsel %vm1042, %v1009, 0
        %v1053 = vsel %vm1042, %v1010, 0
        %v1056 = vsel %vm1042, %v1011, 0
        %v1059 = vsel %vm1042, %v1012, 0
        %v1062 = vsel %vm1042, %v1013, 0
        %v1065 = vsel %vm1042, %v1014, 0
        %v1068 = vsel %vm1042, %v1015, 0
        %v1071 = vsel %vm1042, %v1016, 0
        %v1074 = vsel %vm1042, %v1017, 0
        %v1077 = vsel %vm1042, %v1018, 0
        %v1080 = vsel %vm1042, %v1019, 0
        %v1083 = vsel %vm1042, %v1020, 0
        %v1086 = vsel %vm1042, %v1021, 0
        %v1089 = vsel %vm1042, %v1022, 0
        %v1092 = vsel %vm1042, %v1023, 0
        %v1095 = vsel %vm1042, %v1024, 0
        %v1098 = vsel %vm1042, %v1025, 0
        %v1101 = vsel %vm1042, %v1026, 0
        %v1104 = vsel %vm1042, %v1027, 0
        %v1107 = vsel %vm1042, %v1028, 0
        %v1110 = vsel %vm1042, %v1029, 0
        %v1113 = vsel %vm1042, %v1030, 0
        %v1116 = vsel %vm1042, %v1031, 0
        %v1119 = vsel %vm1042, %v1032, 0
        %v1122 = vsel %vm1042, %v1033, 0
        %v1125 = vsel %vm1042, %v1034, 0
        %v1128 = vsel %vm1042, %v1035, 0
        %v1131 = vsel %vm1042, %v1036, 0
        %1133 = vmatprep.subr.mxu0 0.0
        %1134 = vmatpush1.msra.mxu0 0.0
        %1135 = vmatprep.subr.mxu0 0.0
        %1136 = vmatpush1.msra.mxu0 0.0
        %1137 = vmatprep.subr.mxu0 0.0
        %1138 = vmatpush1.msra.mxu0 0.0
        %1139 = vmatprep.subr.mxu0 0.0
        %1140 = vmatpush1.msra.mxu0 0.0
        %1141 = vmatprep.subr.mxu0 0.0
        %1142 = vmatpush1.msra.mxu0 0.0
        %1143 = vmatprep.subr.mxu0 0.0
        %1144 = vmatpush1.msra.mxu0 0.0
        %1145 = vmatprep.subr.mxu0 0.0
        %1146 = vmatpush1.msra.mxu0 0.0
        %1147 = vmatprep.subr.mxu0 0.0
        %1148 = vmatpush1.msra.mxu0 0.0
        %1149 = vmatprep.subr.mxu0 0.0
        %1150 = vmatpush1.msra.mxu0 0.0
        %1151 = vmatprep.subr.mxu0 0.0
        %1152 = vmatpush1.msra.mxu0 0.0
        %1153 = vmatprep.subr.mxu0 0.0
        %1154 = vmatpush1.msra.mxu0 0.0
        %1155 = vmatprep.subr.mxu0 0.0
        %1156 = vmatpush1.msra.mxu0 0.0
        %1157 = vmatprep.subr.mxu0 0.0
        %1158 = vmatpush1.msra.mxu0 0.0
        %1159 = vmatprep.subr.mxu0 0.0
        %1160 = vmatpush1.msra.mxu0 0.0
        %1161 = vmatprep.subr.mxu0 0.0
        %1162 = vmatpush1.msra.mxu0 0.0
        %1163 = vmatprep.subr.mxu0 0.0
        %1164 = vmatpush1.msra.mxu0 %v1037
        %1165 = vmatprep.subr.mxu0 0.0
        %1166 = vmatpush2.msra.mxu0 0.0
        %1167 = vmatprep.subr.mxu0 0.0
        %1168 = vmatpush2.msra.mxu0 0.0
        %1169 = vmatprep.subr.mxu0 0.0
        %1170 = vmatpush2.msra.mxu0 0.0
        %1171 = vmatprep.subr.mxu0 0.0
        %1172 = vmatpush2.msra.mxu0 0.0
        %1173 = vmatprep.subr.mxu0 0.0
        %1174 = vmatpush2.msra.mxu0 0.0
        %1175 = vmatprep.subr.mxu0 0.0
        %1176 = vmatpush2.msra.mxu0 0.0
        %1177 = vmatprep.subr.mxu0 0.0
        %1178 = vmatpush2.msra.mxu0 0.0
        %1179 = vmatprep.subr.mxu0 0.0
        %1180 = vmatpush2.msra.mxu0 0.0
        %1181 = vmatprep.subr.mxu0 0.0
        %1182 = vmatpush2.msra.mxu0 0.0
        %1183 = vmatprep.subr.mxu0 0.0
        %1184 = vmatpush2.msra.mxu0 0.0
        %1185 = vmatprep.subr.mxu0 0.0
        %1186 = vmatpush2.msra.mxu0 0.0
        %1187 = vmatprep.subr.mxu0 0.0
        %1188 = vmatpush2.msra.mxu0 0.0
        %1189 = vmatprep.subr.mxu0 0.0
        %1190 = vmatpush2.msra.mxu0 0.0
        %1191 = vmatprep.subr.mxu0 0.0
        %1192 = vmatpush2.msra.mxu0 0.0
        %1193 = vmatprep.subr.mxu0 0.0
        %1194 = vmatpush2.msra.mxu0 0.0
        %1195 = vmatprep.subr.mxu0 0.0
        %1196 = vmatpush2.msra.mxu0 0.0
        %1197 = vmatprep.mubr.f32.mxu0 0.0
        %1198 = vmatmul.mubr.f32.gmra.mxu0 %v1044
        %v1199 = vpop.f32.mrf.mxu0
        %v1200 = vadd.f32 %v1041, %v1199
        %v1201 = vpop.f32.mrf.mxu0
        %1202 = vmatprep.mubr.f32.mxu0 0.0
        %1203 = vmatmul.mubr.f32.gmra.mxu0 %v1047
        %v1204 = vpop.f32.mrf.mxu0
        %v1205 = vadd.f32 %v1041, %v1204
        %v1206 = vpop.f32.mrf.mxu0
        %1207 = vmatprep.mubr.f32.mxu0 0.0
        %1208 = vmatmul.mubr.f32.gmra.mxu0 %v1050
        %v1209 = vpop.f32.mrf.mxu0
        %v1210 = vadd.f32 %v1041, %v1209
        %v1211 = vpop.f32.mrf.mxu0
        %1212 = vmatprep.mubr.f32.mxu0 0.0
        %1213 = vmatmul.mubr.f32.gmra.mxu0 %v1053
        %v1214 = vpop.f32.mrf.mxu0
        %v1215 = vadd.f32 %v1041, %v1214
        %v1216 = vpop.f32.mrf.mxu0
        %1217 = vmatprep.mubr.f32.mxu0 0.0
        %1218 = vmatmul.mubr.f32.gmra.mxu0 %v1056
        %v1219 = vpop.f32.mrf.mxu0
        %v1220 = vadd.f32 %v1041, %v1219
        %v1221 = vpop.f32.mrf.mxu0
        %1222 = vmatprep.mubr.f32.mxu0 0.0
        %1223 = vmatmul.mubr.f32.gmra.mxu0 %v1059
        %v1224 = vpop.f32.mrf.mxu0
        %v1225 = vadd.f32 %v1041, %v1224
        %v1226 = vpop.f32.mrf.mxu0
        %1227 = vmatprep.mubr.f32.mxu0 0.0
        %1228 = vmatmul.mubr.f32.gmra.mxu0 %v1062
        %v1229 = vpop.f32.mrf.mxu0
        %v1230 = vadd.f32 %v1041, %v1229
        %v1231 = vpop.f32.mrf.mxu0
        %1232 = vmatprep.mubr.f32.mxu0 0.0
        %1233 = vmatmul.mubr.f32.gmra.mxu0 %v1065
        %v1234 = vpop.f32.mrf.mxu0
        %v1235 = vadd.f32 %v1041, %v1234
        %v1236 = vpop.f32.mrf.mxu0
        %1237 = vmatprep.mubr.f32.mxu0 0.0
        %1238 = vmatmul.mubr.f32.gmra.mxu0 %v1068
        %v1239 = vpop.f32.mrf.mxu0
        %v1240 = vadd.f32 %v1041, %v1239
        %v1241 = vpop.f32.mrf.mxu0
        %1242 = vmatprep.mubr.f32.mxu0 0.0
        %1243 = vmatmul.mubr.f32.gmra.mxu0 %v1071
        %v1244 = vpop.f32.mrf.mxu0
        %v1245 = vadd.f32 %v1041, %v1244
        %v1246 = vpop.f32.mrf.mxu0
        %1247 = vmatprep.mubr.f32.mxu0 0.0
        %1248 = vmatmul.mubr.f32.gmra.mxu0 %v1074
        %v1249 = vpop.f32.mrf.mxu0
        %v1250 = vadd.f32 %v1041, %v1249
        %v1251 = vpop.f32.mrf.mxu0
        %1252 = vmatprep.mubr.f32.mxu0 0.0
        %1253 = vmatmul.mubr.f32.gmra.mxu0 %v1077
        %v1254 = vpop.f32.mrf.mxu0
        %v1255 = vadd.f32 %v1041, %v1254
        %v1256 = vpop.f32.mrf.mxu0
        %1257 = vmatprep.mubr.f32.mxu0 0.0
        %1258 = vmatmul.mubr.f32.gmra.mxu0 %v1080
        %v1259 = vpop.f32.mrf.mxu0
        %v1260 = vadd.f32 %v1041, %v1259
        %v1261 = vpop.f32.mrf.mxu0
        %1262 = vmatprep.mubr.f32.mxu0 0.0
        %1263 = vmatmul.mubr.f32.gmra.mxu0 %v1083
        %v1264 = vpop.f32.mrf.mxu0
        %v1265 = vadd.f32 %v1041, %v1264
        %v1266 = vpop.f32.mrf.mxu0
        %1267 = vmatprep.mubr.f32.mxu0 0.0
        %1268 = vmatmul.mubr.f32.gmra.mxu0 %v1086
        %v1269 = vpop.f32.mrf.mxu0
        %v1270 = vadd.f32 %v1041, %v1269
        %v1271 = vpop.f32.mrf.mxu0
        %1272 = vmatprep.mubr.f32.mxu0 0.0
        %1273 = vmatmul.mubr.f32.gmra.mxu0 %v1089
        %v1274 = vpop.f32.mrf.mxu0
        %v1275 = vadd.f32 %v1041, %v1274
        %v1276 = vpop.f32.mrf.mxu0
        %1277 = vmatprep.mubr.f32.mxu0 0.0
        %1278 = vmatmul.mubr.f32.gmra.mxu0 %v1092
        %v1279 = vpop.f32.mrf.mxu0
        %v1280 = vadd.f32 %v1041, %v1279
        %v1281 = vpop.f32.mrf.mxu0
        %1282 = vmatprep.mubr.f32.mxu0 0.0
        %1283 = vmatmul.mubr.f32.gmra.mxu0 %v1095
        %v1284 = vpop.f32.mrf.mxu0
        %v1285 = vadd.f32 %v1041, %v1284
        %v1286 = vpop.f32.mrf.mxu0
        %1287 = vmatprep.mubr.f32.mxu0 0.0
        %1288 = vmatmul.mubr.f32.gmra.mxu0 %v1098
        %v1289 = vpop.f32.mrf.mxu0
        %v1290 = vadd.f32 %v1041, %v1289
        %v1291 = vpop.f32.mrf.mxu0
        %1292 = vmatprep.mubr.f32.mxu0 0.0
        %1293 = vmatmul.mubr.f32.gmra.mxu0 %v1101
        %v1294 = vpop.f32.mrf.mxu0
        %v1295 = vadd.f32 %v1041, %v1294
        %v1296 = vpop.f32.mrf.mxu0
        %1297 = vmatprep.mubr.f32.mxu0 0.0
        %1298 = vmatmul.mubr.f32.gmra.mxu0 %v1104
        %v1299 = vpop.f32.mrf.mxu0
        %v1300 = vadd.f32 %v1041, %v1299
        %v1301 = vpop.f32.mrf.mxu0
        %1302 = vmatprep.mubr.f32.mxu0 0.0
        %1303 = vmatmul.mubr.f32.gmra.mxu0 %v1107
        %v1304 = vpop.f32.mrf.mxu0
        %v1305 = vadd.f32 %v1041, %v1304
        %v1306 = vpop.f32.mrf.mxu0
        %1307 = vmatprep.mubr.f32.mxu0 0.0
        %1308 = vmatmul.mubr.f32.gmra.mxu0 %v1110
        %v1309 = vpop.f32.mrf.mxu0
        %v1310 = vadd.f32 %v1041, %v1309
        %v1311 = vpop.f32.mrf.mxu0
        %1312 = vmatprep.mubr.f32.mxu0 0.0
        %1313 = vmatmul.mubr.f32.gmra.mxu0 %v1113
        %v1314 = vpop.f32.mrf.mxu0
        %v1315 = vadd.f32 %v1041, %v1314
        %v1316 = vpop.f32.mrf.mxu0
        %1317 = vmatprep.mubr.f32.mxu0 0.0
        %1318 = vmatmul.mubr.f32.gmra.mxu0 %v1116
        %v1319 = vpop.f32.mrf.mxu0
        %v1320 = vadd.f32 %v1041, %v1319
        %v1321 = vpop.f32.mrf.mxu0
        %1322 = vmatprep.mubr.f32.mxu0 0.0
        %1323 = vmatmul.mubr.f32.gmra.mxu0 %v1119
        %v1324 = vpop.f32.mrf.mxu0
        %v1325 = vadd.f32 %v1041, %v1324
        %v1326 = vpop.f32.mrf.mxu0
        %1327 = vmatprep.mubr.f32.mxu0 0.0
        %1328 = vmatmul.mubr.f32.gmra.mxu0 %v1122
        %v1329 = vpop.f32.mrf.mxu0
        %v1330 = vadd.f32 %v1041, %v1329
        %v1331 = vpop.f32.mrf.mxu0
        %1332 = vmatprep.mubr.f32.mxu0 0.0
        %1333 = vmatmul.mubr.f32.gmra.mxu0 %v1125
        %v1334 = vpop.f32.mrf.mxu0
        %v1335 = vadd.f32 %v1041, %v1334
        %v1336 = vpop.f32.mrf.mxu0
        %1337 = vmatprep.mubr.f32.mxu0 0.0
        %1338 = vmatmul.mubr.f32.gmra.mxu0 %v1128
        %v1339 = vpop.f32.mrf.mxu0
        %v1340 = vadd.f32 %v1041, %v1339
        %v1341 = vpop.f32.mrf.mxu0
        %1342 = vmatprep.mubr.f32.mxu0 0.0
        %1343 = vmatmul.mubr.f32.gmra.mxu0 %v1131
        %v1344 = vpop.f32.mrf.mxu0
        %v1345 = vadd.f32 %v1041, %v1344
        %v1346 = vpop.f32.mrf.mxu0
        %1347 = vdwg.mxu0
        %1348 = vadd.xlane.f32.xlu0 %v1200
        %v1349 = vpop.xlane.xlu0 %1348
        %1350 = vadd.xlane.f32.xlu0 %v1205
        %v1351 = vpop.xlane.xlu0 %1350
        %1352 = vadd.xlane.f32.xlu0 %v1210
        %v1353 = vpop.xlane.xlu0 %1352
        %1354 = vadd.xlane.f32.xlu0 %v1215
        %v1355 = vpop.xlane.xlu0 %1354
        %1356 = vadd.xlane.f32.xlu0 %v1220
        %v1357 = vpop.xlane.xlu0 %1356
        %1358 = vadd.xlane.f32.xlu0 %v1225
        %v1359 = vpop.xlane.xlu0 %1358
        %1360 = vadd.xlane.f32.xlu0 %v1230
        %v1361 = vpop.xlane.xlu0 %1360
        %1362 = vadd.xlane.f32.xlu0 %v1235
        %v1363 = vpop.xlane.xlu0 %1362
        %1364 = vadd.xlane.f32.xlu0 %v1240
        %v1365 = vpop.xlane.xlu0 %1364
        %1366 = vadd.xlane.f32.xlu0 %v1245
        %v1367 = vpop.xlane.xlu0 %1366
        %1368 = vadd.xlane.f32.xlu0 %v1250
        %v1369 = vpop.xlane.xlu0 %1368
        %1370 = vadd.xlane.f32.xlu0 %v1255
        %v1371 = vpop.xlane.xlu0 %1370
        %1372 = vadd.xlane.f32.xlu0 %v1260
        %v1373 = vpop.xlane.xlu0 %1372
        %1374 = vadd.xlane.f32.xlu0 %v1265
        %v1375 = vpop.xlane.xlu0 %1374
        %1376 = vadd.xlane.f32.xlu0 %v1270
        %v1377 = vpop.xlane.xlu0 %1376
        %1378 = vadd.xlane.f32.xlu0 %v1275
        %v1379 = vpop.xlane.xlu0 %1378
        %1380 = vadd.xlane.f32.xlu0 %v1280
        %v1381 = vpop.xlane.xlu0 %1380
        %1382 = vadd.xlane.f32.xlu0 %v1285
        %v1383 = vpop.xlane.xlu0 %1382
        %1384 = vadd.xlane.f32.xlu0 %v1290
        %v1385 = vpop.xlane.xlu0 %1384
        %1386 = vadd.xlane.f32.xlu0 %v1295
        %v1387 = vpop.xlane.xlu0 %1386
        %1388 = vadd.xlane.f32.xlu0 %v1300
        %v1389 = vpop.xlane.xlu0 %1388
        %1390 = vadd.xlane.f32.xlu0 %v1305
        %v1391 = vpop.xlane.xlu0 %1390
        %1392 = vadd.xlane.f32.xlu0 %v1310
        %v1393 = vpop.xlane.xlu0 %1392
        %1394 = vadd.xlane.f32.xlu0 %v1315
        %v1395 = vpop.xlane.xlu0 %1394
        %1396 = vadd.xlane.f32.xlu0 %v1320
        %v1397 = vpop.xlane.xlu0 %1396
        %1398 = vadd.xlane.f32.xlu0 %v1325
        %v1399 = vpop.xlane.xlu0 %1398
        %1400 = vadd.xlane.f32.xlu0 %v1330
        %v1401 = vpop.xlane.xlu0 %1400
        %1402 = vadd.xlane.f32.xlu0 %v1335
        %v1403 = vpop.xlane.xlu0 %1402
        %1404 = vadd.xlane.f32.xlu0 %v1340
        %v1405 = vpop.xlane.xlu0 %1404
        %1406 = vadd.xlane.f32.xlu0 %v1345
        %v1407 = vpop.xlane.xlu0 %1406
        %v1408 = vmul.f32 %v1349, %v668
        %v1409 = vmul.f32 %v1351, %v668
        %v1410 = vmul.f32 %v1353, %v668
        %v1411 = vmul.f32 %v1355, %v668
        %v1412 = vmul.f32 %v1357, %v668
        %v1413 = vmul.f32 %v1359, %v668
        %v1414 = vmul.f32 %v1361, %v668
        %v1415 = vmul.f32 %v1363, %v668
        %v1416 = vmul.f32 %v1365, %v668
        %v1417 = vmul.f32 %v1367, %v668
        %v1418 = vmul.f32 %v1369, %v668
        %v1419 = vmul.f32 %v1371, %v668
        %v1420 = vmul.f32 %v1373, %v668
        %v1421 = vmul.f32 %v1375, %v668
        %v1422 = vmul.f32 %v1377, %v668
        %v1423 = vmul.f32 %v1379, %v668
        %v1424 = vmul.f32 %v1381, %v668
        %v1425 = vmul.f32 %v1383, %v668
        %v1426 = vmul.f32 %v1385, %v668
        %v1427 = vmul.f32 %v1387, %v668
        %v1428 = vmul.f32 %v1389, %v668
        %v1429 = vmul.f32 %v1391, %v668
        %v1430 = vmul.f32 %v1393, %v668
        %v1431 = vmul.f32 %v1395, %v668
        %v1432 = vmul.f32 %v1397, %v668
        %v1433 = vmul.f32 %v1399, %v668
        %v1434 = vmul.f32 %v1401, %v668
        %v1435 = vmul.f32 %v1403, %v668
        %v1436 = vmul.f32 %v1405, %v668
        %v1437 = vmul.f32 %v1407, %v668
        %v1438 = vsub.f32 %v1200, %v1408
        %v1439 = vsub.f32 %v1205, %v1409
        %v1440 = vsub.f32 %v1210, %v1410
        %v1441 = vsub.f32 %v1215, %v1411
        %v1442 = vsub.f32 %v1220, %v1412
        %v1443 = vsub.f32 %v1225, %v1413
        %v1444 = vsub.f32 %v1230, %v1414
        %v1445 = vsub.f32 %v1235, %v1415
        %v1446 = vsub.f32 %v1240, %v1416
        %v1447 = vsub.f32 %v1245, %v1417
        %v1448 = vsub.f32 %v1250, %v1418
        %v1449 = vsub.f32 %v1255, %v1419
        %v1450 = vsub.f32 %v1260, %v1420
        %v1451 = vsub.f32 %v1265, %v1421
        %v1452 = vsub.f32 %v1270, %v1422
        %v1453 = vsub.f32 %v1275, %v1423
        %v1454 = vsub.f32 %v1280, %v1424
        %v1455 = vsub.f32 %v1285, %v1425
        %v1456 = vsub.f32 %v1290, %v1426
        %v1457 = vsub.f32 %v1295, %v1427
        %v1458 = vsub.f32 %v1300, %v1428
        %v1459 = vsub.f32 %v1305, %v1429
        %v1460 = vsub.f32 %v1310, %v1430
        %v1461 = vsub.f32 %v1315, %v1431
        %v1462 = vsub.f32 %v1320, %v1432
        %v1463 = vsub.f32 %v1325, %v1433
        %v1464 = vsub.f32 %v1330, %v1434
        %v1465 = vsub.f32 %v1335, %v1435
        %v1466 = vsub.f32 %v1340, %v1436
        %v1467 = vsub.f32 %v1345, %v1437
        %v1468 = vmul.f32 %v1438, %v1438
        %v1469 = vmul.f32 %v1439, %v1439
        %v1470 = vmul.f32 %v1440, %v1440
        %v1471 = vmul.f32 %v1441, %v1441
        %v1472 = vmul.f32 %v1442, %v1442
        %v1473 = vmul.f32 %v1443, %v1443
        %v1474 = vmul.f32 %v1444, %v1444
        %v1475 = vmul.f32 %v1445, %v1445
        %v1476 = vmul.f32 %v1446, %v1446
        %v1477 = vmul.f32 %v1447, %v1447
        %v1478 = vmul.f32 %v1448, %v1448
        %v1479 = vmul.f32 %v1449, %v1449
        %v1480 = vmul.f32 %v1450, %v1450
        %v1481 = vmul.f32 %v1451, %v1451
        %v1482 = vmul.f32 %v1452, %v1452
        %v1483 = vmul.f32 %v1453, %v1453
        %v1484 = vmul.f32 %v1454, %v1454
        %v1485 = vmul.f32 %v1455, %v1455
        %v1486 = vmul.f32 %v1456, %v1456
        %v1487 = vmul.f32 %v1457, %v1457
        %v1488 = vmul.f32 %v1458, %v1458
        %v1489 = vmul.f32 %v1459, %v1459
        %v1490 = vmul.f32 %v1460, %v1460
        %v1491 = vmul.f32 %v1461, %v1461
        %v1492 = vmul.f32 %v1462, %v1462
        %v1493 = vmul.f32 %v1463, %v1463
        %v1494 = vmul.f32 %v1464, %v1464
        %v1495 = vmul.f32 %v1465, %v1465
        %v1496 = vmul.f32 %v1466, %v1466
        %v1497 = vmul.f32 %v1467, %v1467
        %1498 = vadd.xlane.f32.xlu0 %v1468
        %v1499 = vpop.xlane.xlu0 %1498
        %1500 = vadd.xlane.f32.xlu0 %v1469
        %v1501 = vpop.xlane.xlu0 %1500
        %1502 = vadd.xlane.f32.xlu0 %v1470
        %v1503 = vpop.xlane.xlu0 %1502
        %1504 = vadd.xlane.f32.xlu0 %v1471
        %v1505 = vpop.xlane.xlu0 %1504
        %1506 = vadd.xlane.f32.xlu0 %v1472
        %v1507 = vpop.xlane.xlu0 %1506
        %1508 = vadd.xlane.f32.xlu0 %v1473
        %v1509 = vpop.xlane.xlu0 %1508
        %1510 = vadd.xlane.f32.xlu0 %v1474
        %v1511 = vpop.xlane.xlu0 %1510
        %1512 = vadd.xlane.f32.xlu0 %v1475
        %v1513 = vpop.xlane.xlu0 %1512
        %1514 = vadd.xlane.f32.xlu0 %v1476
        %v1515 = vpop.xlane.xlu0 %1514
        %1516 = vadd.xlane.f32.xlu0 %v1477
        %v1517 = vpop.xlane.xlu0 %1516
        %1518 = vadd.xlane.f32.xlu0 %v1478
        %v1519 = vpop.xlane.xlu0 %1518
        %1520 = vadd.xlane.f32.xlu0 %v1479
        %v1521 = vpop.xlane.xlu0 %1520
        %1522 = vadd.xlane.f32.xlu0 %v1480
        %v1523 = vpop.xlane.xlu0 %1522
        %1524 = vadd.xlane.f32.xlu0 %v1481
        %v1525 = vpop.xlane.xlu0 %1524
        %1526 = vadd.xlane.f32.xlu0 %v1482
        %v1527 = vpop.xlane.xlu0 %1526
        %1528 = vadd.xlane.f32.xlu0 %v1483
        %v1529 = vpop.xlane.xlu0 %1528
        %1530 = vadd.xlane.f32.xlu0 %v1484
        %v1531 = vpop.xlane.xlu0 %1530
        %1532 = vadd.xlane.f32.xlu0 %v1485
        %v1533 = vpop.xlane.xlu0 %1532
        %1534 = vadd.xlane.f32.xlu0 %v1486
        %v1535 = vpop.xlane.xlu0 %1534
        %1536 = vadd.xlane.f32.xlu0 %v1487
        %v1537 = vpop.xlane.xlu0 %1536
        %1538 = vadd.xlane.f32.xlu0 %v1488
        %v1539 = vpop.xlane.xlu0 %1538
        %1540 = vadd.xlane.f32.xlu0 %v1489
        %v1541 = vpop.xlane.xlu0 %1540
        %1542 = vadd.xlane.f32.xlu0 %v1490
        %v1543 = vpop.xlane.xlu0 %1542
        %1544 = vadd.xlane.f32.xlu0 %v1491
        %v1545 = vpop.xlane.xlu0 %1544
        %1546 = vadd.xlane.f32.xlu0 %v1492
        %v1547 = vpop.xlane.xlu0 %1546
        %1548 = vadd.xlane.f32.xlu0 %v1493
        %v1549 = vpop.xlane.xlu0 %1548
        %1550 = vadd.xlane.f32.xlu0 %v1494
        %v1551 = vpop.xlane.xlu0 %1550
        %1552 = vadd.xlane.f32.xlu0 %v1495
        %v1553 = vpop.xlane.xlu0 %1552
        %1554 = vadd.xlane.f32.xlu0 %v1496
        %v1555 = vpop.xlane.xlu0 %1554
        %1556 = vadd.xlane.f32.xlu0 %v1497
        %v1557 = vpop.xlane.xlu0 %1556
        %v1558 = vmul.f32 %v1499, %v668
        %v1559 = vmul.f32 %v1501, %v668
        %v1560 = vmul.f32 %v1503, %v668
        %v1561 = vmul.f32 %v1505, %v668
        %v1562 = vmul.f32 %v1507, %v668
        %v1563 = vmul.f32 %v1509, %v668
        %v1564 = vmul.f32 %v1511, %v668
        %v1565 = vmul.f32 %v1513, %v668
        %v1566 = vmul.f32 %v1515, %v668
        %v1567 = vmul.f32 %v1517, %v668
        %v1568 = vmul.f32 %v1519, %v668
        %v1569 = vmul.f32 %v1521, %v668
        %v1570 = vmul.f32 %v1523, %v668
        %v1571 = vmul.f32 %v1525, %v668
        %v1572 = vmul.f32 %v1527, %v668
        %v1573 = vmul.f32 %v1529, %v668
        %v1574 = vmul.f32 %v1531, %v668
        %v1575 = vmul.f32 %v1533, %v668
        %v1576 = vmul.f32 %v1535, %v668
        %v1577 = vmul.f32 %v1537, %v668
        %v1578 = vmul.f32 %v1539, %v668
        %v1579 = vmul.f32 %v1541, %v668
        %v1580 = vmul.f32 %v1543, %v668
        %v1581 = vmul.f32 %v1545, %v668
        %v1582 = vmul.f32 %v1547, %v668
        %v1583 = vmul.f32 %v1549, %v668
        %v1584 = vmul.f32 %v1551, %v668
        %v1585 = vmul.f32 %v1553, %v668
        %v1586 = vmul.f32 %v1555, %v668
        %v1587 = vmul.f32 %v1557, %v668
        %v1588 = vadd.f32 %v1558, 1e-12
        %v1589 = vadd.f32 %v1559, 1e-12
        %v1590 = vadd.f32 %v1560, 1e-12
        %v1591 = vadd.f32 %v1561, 1e-12
        %v1592 = vadd.f32 %v1562, 1e-12
        %v1593 = vadd.f32 %v1563, 1e-12
        %v1594 = vadd.f32 %v1564, 1e-12
        %v1595 = vadd.f32 %v1565, 1e-12
        %v1596 = vadd.f32 %v1566, 1e-12
        %v1597 = vadd.f32 %v1567, 1e-12
        %v1598 = vadd.f32 %v1568, 1e-12
        %v1599 = vadd.f32 %v1569, 1e-12
        %v1600 = vadd.f32 %v1570, 1e-12
        %v1601 = vadd.f32 %v1571, 1e-12
        %v1602 = vadd.f32 %v1572, 1e-12
        %v1603 = vadd.f32 %v1573, 1e-12
        %v1604 = vadd.f32 %v1574, 1e-12
        %v1605 = vadd.f32 %v1575, 1e-12
        %v1606 = vadd.f32 %v1576, 1e-12
        %v1607 = vadd.f32 %v1577, 1e-12
        %v1608 = vadd.f32 %v1578, 1e-12
        %v1609 = vadd.f32 %v1579, 1e-12
        %v1610 = vadd.f32 %v1580, 1e-12
        %v1611 = vadd.f32 %v1581, 1e-12
        %v1612 = vadd.f32 %v1582, 1e-12
        %v1613 = vadd.f32 %v1583, 1e-12
        %v1614 = vadd.f32 %v1584, 1e-12
        %v1615 = vadd.f32 %v1585, 1e-12
        %v1616 = vadd.f32 %v1586, 1e-12
        %v1617 = vadd.f32 %v1587, 1e-12
        %v1618 = vrsqrt.pop %v1588
        %v1619 = vrsqrt.pop %v1589
        %v1620 = vrsqrt.pop %v1590
        %v1621 = vrsqrt.pop %v1591
        %v1622 = vrsqrt.pop %v1592
        %v1623 = vrsqrt.pop %v1593
        %v1624 = vrsqrt.pop %v1594
        %v1625 = vrsqrt.pop %v1595
        %v1626 = vrsqrt.pop %v1596
        %v1627 = vrsqrt.pop %v1597
        %v1628 = vrsqrt.pop %v1598
        %v1629 = vrsqrt.pop %v1599
        %v1630 = vrsqrt.pop %v1600
        %v1631 = vrsqrt.pop %v1601
        %v1632 = vrsqrt.pop %v1602
        %v1633 = vrsqrt.pop %v1603
        %v1634 = vrsqrt.pop %v1604
        %v1635 = vrsqrt.pop %v1605
        %v1636 = vrsqrt.pop %v1606
        %v1637 = vrsqrt.pop %v1607
        %v1638 = vrsqrt.pop %v1608
        %v1639 = vrsqrt.pop %v1609
        %v1640 = vrsqrt.pop %v1610
        %v1641 = vrsqrt.pop %v1611
        %v1642 = vrsqrt.pop %v1612
        %v1643 = vrsqrt.pop %v1613
        %v1644 = vrsqrt.pop %v1614
        %v1645 = vrsqrt.pop %v1615
        %v1646 = vrsqrt.pop %v1616
        %v1647 = vrsqrt.pop %v1617
        %v1648 = vmul.f32 %v1438, %v1618
        %v1649 = vmul.f32 %v1439, %v1619
        %v1650 = vmul.f32 %v1440, %v1620
        %v1651 = vmul.f32 %v1441, %v1621
        %v1652 = vmul.f32 %v1442, %v1622
        %v1653 = vmul.f32 %v1443, %v1623
        %v1654 = vmul.f32 %v1444, %v1624
        %v1655 = vmul.f32 %v1445, %v1625
        %v1656 = vmul.f32 %v1446, %v1626
        %v1657 = vmul.f32 %v1447, %v1627
        %v1658 = vmul.f32 %v1448, %v1628
        %v1659 = vmul.f32 %v1449, %v1629
        %v1660 = vmul.f32 %v1450, %v1630
        %v1661 = vmul.f32 %v1451, %v1631
        %v1662 = vmul.f32 %v1452, %v1632
        %v1663 = vmul.f32 %v1453, %v1633
        %v1664 = vmul.f32 %v1454, %v1634
        %v1665 = vmul.f32 %v1455, %v1635
        %v1666 = vmul.f32 %v1456, %v1636
        %v1667 = vmul.f32 %v1457, %v1637
        %v1668 = vmul.f32 %v1458, %v1638
        %v1669 = vmul.f32 %v1459, %v1639
        %v1670 = vmul.f32 %v1460, %v1640
        %v1671 = vmul.f32 %v1461, %v1641
        %v1672 = vmul.f32 %v1462, %v1642
        %v1673 = vmul.f32 %v1463, %v1643
        %v1674 = vmul.f32 %v1464, %v1644
        %v1675 = vmul.f32 %v1465, %v1645
        %v1676 = vmul.f32 %v1466, %v1646
        %v1677 = vmul.f32 %v1467, %v1647
        %v1678 = vlaneseq
        %v1679 = vshrl.u32 %v1678, 7
        %v1680 = vsub.s32 4, %v1679
        %v1681 = vrot.slane %v295, %v1680
        %v1682 = vmul.f32 %v1648, %v1681
        %v1683 = vmul.f32 %v1649, %v1681
        %v1684 = vmul.f32 %v1650, %v1681
        %v1685 = vmul.f32 %v1651, %v1681
        %v1686 = vmul.f32 %v1652, %v1681
        %v1687 = vmul.f32 %v1653, %v1681
        %v1688 = vmul.f32 %v1654, %v1681
        %v1689 = vmul.f32 %v1655, %v1681
        %v1690 = vmul.f32 %v1656, %v1681
        %v1691 = vmul.f32 %v1657, %v1681
        %v1692 = vmul.f32 %v1658, %v1681
        %v1693 = vmul.f32 %v1659, %v1681
        %v1694 = vmul.f32 %v1660, %v1681
        %v1695 = vmul.f32 %v1661, %v1681
        %v1696 = vmul.f32 %v1662, %v1681
        %v1697 = vmul.f32 %v1663, %v1681
        %v1698 = vmul.f32 %v1664, %v1681
        %v1699 = vmul.f32 %v1665, %v1681
        %v1700 = vmul.f32 %v1666, %v1681
        %v1701 = vmul.f32 %v1667, %v1681
        %v1702 = vmul.f32 %v1668, %v1681
        %v1703 = vmul.f32 %v1669, %v1681
        %v1704 = vmul.f32 %v1670, %v1681
        %v1705 = vmul.f32 %v1671, %v1681
        %v1706 = vmul.f32 %v1672, %v1681
        %v1707 = vmul.f32 %v1673, %v1681
        %v1708 = vmul.f32 %v1674, %v1681
        %v1709 = vmul.f32 %v1675, %v1681
        %v1710 = vmul.f32 %v1676, %v1681
        %v1711 = vmul.f32 %v1677, %v1681
        %v1712 = vlaneseq
        %v1713 = vshrl.u32 %v1712, 7
        %v1714 = vsub.s32 5, %v1713
        %v1715 = vrot.slane %v295, %v1714
        %v1716 = vadd.f32 %v1682, %v1715
        %v1717 = vadd.f32 %v1683, %v1715
        %v1718 = vadd.f32 %v1684, %v1715
        %v1719 = vadd.f32 %v1685, %v1715
        %v1720 = vadd.f32 %v1686, %v1715
        %v1721 = vadd.f32 %v1687, %v1715
        %v1722 = vadd.f32 %v1688, %v1715
        %v1723 = vadd.f32 %v1689, %v1715
        %v1724 = vadd.f32 %v1690, %v1715
        %v1725 = vadd.f32 %v1691, %v1715
        %v1726 = vadd.f32 %v1692, %v1715
        %v1727 = vadd.f32 %v1693, %v1715
        %v1728 = vadd.f32 %v1694, %v1715
        %v1729 = vadd.f32 %v1695, %v1715
        %v1730 = vadd.f32 %v1696, %v1715
        %v1731 = vadd.f32 %v1697, %v1715
        %v1732 = vadd.f32 %v1698, %v1715
        %v1733 = vadd.f32 %v1699, %v1715
        %v1734 = vadd.f32 %v1700, %v1715
        %v1735 = vadd.f32 %v1701, %v1715
        %v1736 = vadd.f32 %v1702, %v1715
        %v1737 = vadd.f32 %v1703, %v1715
        %v1738 = vadd.f32 %v1704, %v1715
        %v1739 = vadd.f32 %v1705, %v1715
        %v1740 = vadd.f32 %v1706, %v1715
        %v1741 = vadd.f32 %v1707, %v1715
        %v1742 = vadd.f32 %v1708, %v1715
        %v1743 = vadd.f32 %v1709, %v1715
        %v1744 = vadd.f32 %v1710, %v1715
        %v1745 = vadd.f32 %v1711, %v1715
        %v1746 = vcvt.f32.s32.to.zero.pseudo %v1007
        %v1747 = vcvt.f32.s32.to.zero.pseudo %v1008
        %v1748 = vcvt.f32.s32.to.zero.pseudo %v1009
        %v1749 = vcvt.f32.s32.to.zero.pseudo %v1010
        %v1750 = vcvt.f32.s32.to.zero.pseudo %v1011
        %v1751 = vcvt.f32.s32.to.zero.pseudo %v1012
        %v1752 = vcvt.f32.s32.to.zero.pseudo %v1013
        %v1753 = vcvt.f32.s32.to.zero.pseudo %v1014
        %v1754 = vcvt.f32.s32.to.zero.pseudo %v1015
        %v1755 = vcvt.f32.s32.to.zero.pseudo %v1016
        %v1756 = vcvt.f32.s32.to.zero.pseudo %v1017
        %v1757 = vcvt.f32.s32.to.zero.pseudo %v1018
        %v1758 = vcvt.f32.s32.to.zero.pseudo %v1019
        %v1759 = vcvt.f32.s32.to.zero.pseudo %v1020
        %v1760 = vcvt.f32.s32.to.zero.pseudo %v1021
        %v1761 = vcvt.f32.s32.to.zero.pseudo %v1022
        %v1762 = vcvt.f32.s32.to.zero.pseudo %v1023
        %v1763 = vcvt.f32.s32.to.zero.pseudo %v1024
        %v1764 = vcvt.f32.s32.to.zero.pseudo %v1025
        %v1765 = vcvt.f32.s32.to.zero.pseudo %v1026
        %v1766 = vcvt.f32.s32.to.zero.pseudo %v1027
        %v1767 = vcvt.f32.s32.to.zero.pseudo %v1028
        %v1768 = vcvt.f32.s32.to.zero.pseudo %v1029
        %v1769 = vcvt.f32.s32.to.zero.pseudo %v1030
        %v1770 = vcvt.f32.s32.to.zero.pseudo %v1031
        %v1771 = vcvt.f32.s32.to.zero.pseudo %v1032
        %v1772 = vcvt.f32.s32.to.zero.pseudo %v1033
        %v1773 = vcvt.f32.s32.to.zero.pseudo %v1034
        %v1774 = vcvt.f32.s32.to.zero.pseudo %v1035
        %v1775 = vcvt.f32.s32.to.zero.pseudo %v1036
        %v1776 = vlaneseq
        %v1777 = vand.u32 %v1776, 127
        %1778 = vset.pattern.permute.xlu0 7
        %1779 = vperm.xlu0 %1778, %v1746
        %v1780 = vpop.permute.xlu0 %1779
        %1781 = vset.pattern.permute.xlu0 7
        %1782 = vperm.xlu0 %1781, %v1747
        %v1783 = vpop.permute.xlu0 %1782
        %1784 = vset.pattern.permute.xlu0 7
        %1785 = vperm.xlu0 %1784, %v1748
        %v1786 = vpop.permute.xlu0 %1785
        %1787 = vset.pattern.permute.xlu0 7
        %1788 = vperm.xlu0 %1787, %v1749
        %v1789 = vpop.permute.xlu0 %1788
        %1790 = vset.pattern.permute.xlu0 7
        %1791 = vperm.xlu0 %1790, %v1750
        %v1792 = vpop.permute.xlu0 %1791
        %1793 = vset.pattern.permute.xlu0 7
        %1794 = vperm.xlu0 %1793, %v1751
        %v1795 = vpop.permute.xlu0 %1794
        %1796 = vset.pattern.permute.xlu0 7
        %1797 = vperm.xlu0 %1796, %v1752
        %v1798 = vpop.permute.xlu0 %1797
        %1799 = vset.pattern.permute.xlu0 7
        %1800 = vperm.xlu0 %1799, %v1753
        %v1801 = vpop.permute.xlu0 %1800
        %1802 = vset.pattern.permute.xlu0 7
        %1803 = vperm.xlu0 %1802, %v1754
        %v1804 = vpop.permute.xlu0 %1803
        %1805 = vset.pattern.permute.xlu0 7
        %1806 = vperm.xlu0 %1805, %v1755
        %v1807 = vpop.permute.xlu0 %1806
        %1808 = vset.pattern.permute.xlu0 7
        %1809 = vperm.xlu0 %1808, %v1756
        %v1810 = vpop.permute.xlu0 %1809
        %1811 = vset.pattern.permute.xlu0 7
        %1812 = vperm.xlu0 %1811, %v1757
        %v1813 = vpop.permute.xlu0 %1812
        %1814 = vset.pattern.permute.xlu0 7
        %1815 = vperm.xlu0 %1814, %v1758
        %v1816 = vpop.permute.xlu0 %1815
        %1817 = vset.pattern.permute.xlu0 7
        %1818 = vperm.xlu0 %1817, %v1759
        %v1819 = vpop.permute.xlu0 %1818
        %1820 = vset.pattern.permute.xlu0 7
        %1821 = vperm.xlu0 %1820, %v1760
        %v1822 = vpop.permute.xlu0 %1821
        %1823 = vset.pattern.permute.xlu0 7
        %1824 = vperm.xlu0 %1823, %v1761
        %v1825 = vpop.permute.xlu0 %1824
        %1826 = vset.pattern.permute.xlu0 7
        %1827 = vperm.xlu0 %1826, %v1762
        %v1828 = vpop.permute.xlu0 %1827
        %1829 = vset.pattern.permute.xlu0 7
        %1830 = vperm.xlu0 %1829, %v1763
        %v1831 = vpop.permute.xlu0 %1830
        %1832 = vset.pattern.permute.xlu0 7
        %1833 = vperm.xlu0 %1832, %v1764
        %v1834 = vpop.permute.xlu0 %1833
        %1835 = vset.pattern.permute.xlu0 7
        %1836 = vperm.xlu0 %1835, %v1765
        %v1837 = vpop.permute.xlu0 %1836
        %1838 = vset.pattern.permute.xlu0 7
        %1839 = vperm.xlu0 %1838, %v1766
        %v1840 = vpop.permute.xlu0 %1839
        %1841 = vset.pattern.permute.xlu0 7
        %1842 = vperm.xlu0 %1841, %v1767
        %v1843 = vpop.permute.xlu0 %1842
        %1844 = vset.pattern.permute.xlu0 7
        %1845 = vperm.xlu0 %1844, %v1768
        %v1846 = vpop.permute.xlu0 %1845
        %1847 = vset.pattern.permute.xlu0 7
        %1848 = vperm.xlu0 %1847, %v1769
        %v1849 = vpop.permute.xlu0 %1848
        %1850 = vset.pattern.permute.xlu0 7
        %1851 = vperm.xlu0 %1850, %v1770
        %v1852 = vpop.permute.xlu0 %1851
        %1853 = vset.pattern.permute.xlu0 7
        %1854 = vperm.xlu0 %1853, %v1771
        %v1855 = vpop.permute.xlu0 %1854
        %1856 = vset.pattern.permute.xlu0 7
        %1857 = vperm.xlu0 %1856, %v1772
        %v1858 = vpop.permute.xlu0 %1857
        %1859 = vset.pattern.permute.xlu0 7
        %1860 = vperm.xlu0 %1859, %v1773
        %v1861 = vpop.permute.xlu0 %1860
        %1862 = vset.pattern.permute.xlu0 7
        %1863 = vperm.xlu0 %1862, %v1774
        %v1864 = vpop.permute.xlu0 %1863
        %1865 = vset.pattern.permute.xlu0 7
        %1866 = vperm.xlu0 %1865, %v1775
        %v1867 = vpop.permute.xlu0 %1866
        %vm1868 = vcmp.eq.s32.totalorder %v1777, %v1780
        %vm1869 = vcmp.eq.s32.totalorder %v1777, %v1783
        %vm1870 = vcmp.eq.s32.totalorder %v1777, %v1786
        %vm1871 = vcmp.eq.s32.totalorder %v1777, %v1789
        %vm1872 = vcmp.eq.s32.totalorder %v1777, %v1792
        %vm1873 = vcmp.eq.s32.totalorder %v1777, %v1795
        %vm1874 = vcmp.eq.s32.totalorder %v1777, %v1798
        %vm1875 = vcmp.eq.s32.totalorder %v1777, %v1801
        %vm1876 = vcmp.eq.s32.totalorder %v1777, %v1804
        %vm1877 = vcmp.eq.s32.totalorder %v1777, %v1807
        %vm1878 = vcmp.eq.s32.totalorder %v1777, %v1810
        %vm1879 = vcmp.eq.s32.totalorder %v1777, %v1813
        %vm1880 = vcmp.eq.s32.totalorder %v1777, %v1816
        %vm1881 = vcmp.eq.s32.totalorder %v1777, %v1819
        %vm1882 = vcmp.eq.s32.totalorder %v1777, %v1822
        %vm1883 = vcmp.eq.s32.totalorder %v1777, %v1825
        %vm1884 = vcmp.eq.s32.totalorder %v1777, %v1828
        %vm1885 = vcmp.eq.s32.totalorder %v1777, %v1831
        %vm1886 = vcmp.eq.s32.totalorder %v1777, %v1834
        %vm1887 = vcmp.eq.s32.totalorder %v1777, %v1837
        %vm1888 = vcmp.eq.s32.totalorder %v1777, %v1840
        %vm1889 = vcmp.eq.s32.totalorder %v1777, %v1843
        %vm1890 = vcmp.eq.s32.totalorder %v1777, %v1846
        %vm1891 = vcmp.eq.s32.totalorder %v1777, %v1849
        %vm1892 = vcmp.eq.s32.totalorder %v1777, %v1852
        %vm1893 = vcmp.eq.s32.totalorder %v1777, %v1855
        %vm1894 = vcmp.eq.s32.totalorder %v1777, %v1858
        %vm1895 = vcmp.eq.s32.totalorder %v1777, %v1861
        %vm1896 = vcmp.eq.s32.totalorder %v1777, %v1864
        %vm1897 = vcmp.eq.s32.totalorder %v1777, %v1867
        %v1898 = vsel %vm1868, 1, 0
        %v1899 = vsel %vm1869, 1, 0
        %v1900 = vsel %vm1870, 1, 0
        %v1901 = vsel %vm1871, 1, 0
        %v1902 = vsel %vm1872, 1, 0
        %v1903 = vsel %vm1873, 1, 0
        %v1904 = vsel %vm1874, 1, 0
        %v1905 = vsel %vm1875, 1, 0
        %v1906 = vsel %vm1876, 1, 0
        %v1907 = vsel %vm1877, 1, 0
        %v1908 = vsel %vm1878, 1, 0
        %v1909 = vsel %vm1879, 1, 0
        %v1910 = vsel %vm1880, 1, 0
        %v1911 = vsel %vm1881, 1, 0
        %v1912 = vsel %vm1882, 1, 0
        %v1913 = vsel %vm1883, 1, 0
        %v1914 = vsel %vm1884, 1, 0
        %v1915 = vsel %vm1885, 1, 0
        %v1916 = vsel %vm1886, 1, 0
        %v1917 = vsel %vm1887, 1, 0
        %v1918 = vsel %vm1888, 1, 0
        %v1919 = vsel %vm1889, 1, 0
        %v1920 = vsel %vm1890, 1, 0
        %v1921 = vsel %vm1891, 1, 0
        %v1922 = vsel %vm1892, 1, 0
        %v1923 = vsel %vm1893, 1, 0
        %v1924 = vsel %vm1894, 1, 0
        %v1925 = vsel %vm1895, 1, 0
        %v1926 = vsel %vm1896, 1, 0
        %v1927 = vsel %vm1897, 1, 0
        %v1928 = vcvt.s32.f32 %v1898
        %v1929 = vcvt.s32.f32 %v1899
        %v1930 = vcvt.s32.f32 %v1900
        %v1931 = vcvt.s32.f32 %v1901
        %v1932 = vcvt.s32.f32 %v1902
        %v1933 = vcvt.s32.f32 %v1903
        %v1934 = vcvt.s32.f32 %v1904
        %v1935 = vcvt.s32.f32 %v1905
        %v1936 = vcvt.s32.f32 %v1906
        %v1937 = vcvt.s32.f32 %v1907
        %v1938 = vcvt.s32.f32 %v1908
        %v1939 = vcvt.s32.f32 %v1909
        %v1940 = vcvt.s32.f32 %v1910
        %v1941 = vcvt.s32.f32 %v1911
        %v1942 = vcvt.s32.f32 %v1912
        %v1943 = vcvt.s32.f32 %v1913
        %v1944 = vcvt.s32.f32 %v1914
        %v1945 = vcvt.s32.f32 %v1915
        %v1946 = vcvt.s32.f32 %v1916
        %v1947 = vcvt.s32.f32 %v1917
        %v1948 = vcvt.s32.f32 %v1918
        %v1949 = vcvt.s32.f32 %v1919
        %v1950 = vcvt.s32.f32 %v1920
        %v1951 = vcvt.s32.f32 %v1921
        %v1952 = vcvt.s32.f32 %v1922
        %v1953 = vcvt.s32.f32 %v1923
        %v1954 = vcvt.s32.f32 %v1924
        %v1955 = vcvt.s32.f32 %v1925
        %v1956 = vcvt.s32.f32 %v1926
        %v1957 = vcvt.s32.f32 %v1927
        %v1958 = vld [vmem:[%s4] sm:$0xff]
        %v1960 = vsel %vm1042, %v1928, 0
        %v1963 = vsel %vm1042, %v1929, 0
        %v1966 = vsel %vm1042, %v1930, 0
        %v1969 = vsel %vm1042, %v1931, 0
        %v1972 = vsel %vm1042, %v1932, 0
        %v1975 = vsel %vm1042, %v1933, 0
        %v1978 = vsel %vm1042, %v1934, 0
        %v1981 = vsel %vm1042, %v1935, 0
        %v1984 = vsel %vm1042, %v1936, 0
        %v1987 = vsel %vm1042, %v1937, 0
        %v1990 = vsel %vm1042, %v1938, 0
        %v1993 = vsel %vm1042, %v1939, 0
        %v1996 = vsel %vm1042, %v1940, 0
        %v1999 = vsel %vm1042, %v1941, 0
        %v2002 = vsel %vm1042, %v1942, 0
        %v2005 = vsel %vm1042, %v1943, 0
        %v2008 = vsel %vm1042, %v1944, 0
        %v2011 = vsel %vm1042, %v1945, 0
        %v2014 = vsel %vm1042, %v1946, 0
        %v2017 = vsel %vm1042, %v1947, 0
        %v2020 = vsel %vm1042, %v1948, 0
        %v2023 = vsel %vm1042, %v1949, 0
        %v2026 = vsel %vm1042, %v1950, 0
        %v2029 = vsel %vm1042, %v1951, 0
        %v2032 = vsel %vm1042, %v1952, 0
        %v2035 = vsel %vm1042, %v1953, 0
        %v2038 = vsel %vm1042, %v1954, 0
        %v2041 = vsel %vm1042, %v1955, 0
        %v2044 = vsel %vm1042, %v1956, 0
        %v2047 = vsel %vm1042, %v1957, 0
        %2049 = vmatprep.subr.mxu0 0.0
        %2050 = vmatpush1.msra.mxu0 0.0
        %2051 = vmatprep.subr.mxu0 0.0
        %2052 = vmatpush1.msra.mxu0 0.0
        %2053 = vmatprep.subr.mxu0 0.0
        %2054 = vmatpush1.msra.mxu0 0.0
        %2055 = vmatprep.subr.mxu0 0.0
        %2056 = vmatpush1.msra.mxu0 0.0
        %2057 = vmatprep.subr.mxu0 0.0
        %2058 = vmatpush1.msra.mxu0 0.0
        %2059 = vmatprep.subr.mxu0 0.0
        %2060 = vmatpush1.msra.mxu0 0.0
        %2061 = vmatprep.subr.mxu0 0.0
        %2062 = vmatpush1.msra.mxu0 0.0
        %2063 = vmatprep.subr.mxu0 0.0
        %2064 = vmatpush1.msra.mxu0 0.0
        %2065 = vmatprep.subr.mxu0 0.0
        %2066 = vmatpush1.msra.mxu0 0.0
        %2067 = vmatprep.subr.mxu0 0.0
        %2068 = vmatpush1.msra.mxu0 0.0
        %2069 = vmatprep.subr.mxu0 0.0
        %2070 = vmatpush1.msra.mxu0 0.0
        %2071 = vmatprep.subr.mxu0 0.0
        %2072 = vmatpush1.msra.mxu0 0.0
        %2073 = vmatprep.subr.mxu0 0.0
        %2074 = vmatpush1.msra.mxu0 0.0
        %2075 = vmatprep.subr.mxu0 0.0
        %2076 = vmatpush1.msra.mxu0 0.0
        %2077 = vmatprep.subr.mxu0 0.0
        %2078 = vmatpush1.msra.mxu0 0.0
        %2079 = vmatprep.subr.mxu0 0.0
        %2080 = vmatpush1.msra.mxu0 %v1958
        %2081 = vmatprep.subr.mxu0 0.0
        %2082 = vmatpush2.msra.mxu0 0.0
        %2083 = vmatprep.subr.mxu0 0.0
        %2084 = vmatpush2.msra.mxu0 0.0
        %2085 = vmatprep.subr.mxu0 0.0
        %2086 = vmatpush2.msra.mxu0 0.0
        %2087 = vmatprep.subr.mxu0 0.0
        %2088 = vmatpush2.msra.mxu0 0.0
        %2089 = vmatprep.subr.mxu0 0.0
        %2090 = vmatpush2.msra.mxu0 0.0
        %2091 = vmatprep.subr.mxu0 0.0
        %2092 = vmatpush2.msra.mxu0 0.0
        %2093 = vmatprep.subr.mxu0 0.0
        %2094 = vmatpush2.msra.mxu0 0.0
        %2095 = vmatprep.subr.mxu0 0.0
        %2096 = vmatpush2.msra.mxu0 0.0
        %2097 = vmatprep.subr.mxu0 0.0
        %2098 = vmatpush2.msra.mxu0 0.0
        %2099 = vmatprep.subr.mxu0 0.0
        %2100 = vmatpush2.msra.mxu0 0.0
        %2101 = vmatprep.subr.mxu0 0.0
        %2102 = vmatpush2.msra.mxu0 0.0
        %2103 = vmatprep.subr.mxu0 0.0
        %2104 = vmatpush2.msra.mxu0 0.0
        %2105 = vmatprep.subr.mxu0 0.0
        %2106 = vmatpush2.msra.mxu0 0.0
        %2107 = vmatprep.subr.mxu0 0.0
        %2108 = vmatpush2.msra.mxu0 0.0
        %2109 = vmatprep.subr.mxu0 0.0
        %2110 = vmatpush2.msra.mxu0 0.0
        %2111 = vmatprep.subr.mxu0 0.0
        %2112 = vmatpush2.msra.mxu0 0.0
        %2113 = vmatprep.mubr.f32.mxu0 0.0
        %2114 = vmatmul.mubr.f32.gmra.mxu0 %v1960
        %v2115 = vpop.f32.mrf.mxu0
        %v2116 = vadd.f32 0.0, %v2115
        %v2117 = vpop.f32.mrf.mxu0
        %2118 = vmatprep.mubr.f32.mxu0 0.0
        %2119 = vmatmul.mubr.f32.gmra.mxu0 %v1963
        %v2120 = vpop.f32.mrf.mxu0
        %v2121 = vadd.f32 0.0, %v2120
        %v2122 = vpop.f32.mrf.mxu0
        %2123 = vmatprep.mubr.f32.mxu0 0.0
        %2124 = vmatmul.mubr.f32.gmra.mxu0 %v1966
        %v2125 = vpop.f32.mrf.mxu0
        %v2126 = vadd.f32 0.0, %v2125
        %v2127 = vpop.f32.mrf.mxu0
        %2128 = vmatprep.mubr.f32.mxu0 0.0
        %2129 = vmatmul.mubr.f32.gmra.mxu0 %v1969
        %v2130 = vpop.f32.mrf.mxu0
        %v2131 = vadd.f32 0.0, %v2130
        %v2132 = vpop.f32.mrf.mxu0
        %2133 = vmatprep.mubr.f32.mxu0 0.0
        %2134 = vmatmul.mubr.f32.gmra.mxu0 %v1972
        %v2135 = vpop.f32.mrf.mxu0
        %v2136 = vadd.f32 0.0, %v2135
        %v2137 = vpop.f32.mrf.mxu0
        %2138 = vmatprep.mubr.f32.mxu0 0.0
        %2139 = vmatmul.mubr.f32.gmra.mxu0 %v1975
        %v2140 = vpop.f32.mrf.mxu0
        %v2141 = vadd.f32 0.0, %v2140
        %v2142 = vpop.f32.mrf.mxu0
        %2143 = vmatprep.mubr.f32.mxu0 0.0
        %2144 = vmatmul.mubr.f32.gmra.mxu0 %v1978
        %v2145 = vpop.f32.mrf.mxu0
        %v2146 = vadd.f32 0.0, %v2145
        %v2147 = vpop.f32.mrf.mxu0
        %2148 = vmatprep.mubr.f32.mxu0 0.0
        %2149 = vmatmul.mubr.f32.gmra.mxu0 %v1981
        %v2150 = vpop.f32.mrf.mxu0
        %v2151 = vadd.f32 0.0, %v2150
        %v2152 = vpop.f32.mrf.mxu0
        %2153 = vmatprep.mubr.f32.mxu0 0.0
        %2154 = vmatmul.mubr.f32.gmra.mxu0 %v1984
        %v2155 = vpop.f32.mrf.mxu0
        %v2156 = vadd.f32 0.0, %v2155
        %v2157 = vpop.f32.mrf.mxu0
        %2158 = vmatprep.mubr.f32.mxu0 0.0
        %2159 = vmatmul.mubr.f32.gmra.mxu0 %v1987
        %v2160 = vpop.f32.mrf.mxu0
        %v2161 = vadd.f32 0.0, %v2160
        %v2162 = vpop.f32.mrf.mxu0
        %2163 = vmatprep.mubr.f32.mxu0 0.0
        %2164 = vmatmul.mubr.f32.gmra.mxu0 %v1990
        %v2165 = vpop.f32.mrf.mxu0
        %v2166 = vadd.f32 0.0, %v2165
        %v2167 = vpop.f32.mrf.mxu0
        %2168 = vmatprep.mubr.f32.mxu0 0.0
        %2169 = vmatmul.mubr.f32.gmra.mxu0 %v1993
        %v2170 = vpop.f32.mrf.mxu0
        %v2171 = vadd.f32 0.0, %v2170
        %v2172 = vpop.f32.mrf.mxu0
        %2173 = vmatprep.mubr.f32.mxu0 0.0
        %2174 = vmatmul.mubr.f32.gmra.mxu0 %v1996
        %v2175 = vpop.f32.mrf.mxu0
        %v2176 = vadd.f32 0.0, %v2175
        %v2177 = vpop.f32.mrf.mxu0
        %2178 = vmatprep.mubr.f32.mxu0 0.0
        %2179 = vmatmul.mubr.f32.gmra.mxu0 %v1999
        %v2180 = vpop.f32.mrf.mxu0
        %v2181 = vadd.f32 0.0, %v2180
        %v2182 = vpop.f32.mrf.mxu0
        %2183 = vmatprep.mubr.f32.mxu0 0.0
        %2184 = vmatmul.mubr.f32.gmra.mxu0 %v2002
        %v2185 = vpop.f32.mrf.mxu0
        %v2186 = vadd.f32 0.0, %v2185
        %v2187 = vpop.f32.mrf.mxu0
        %2188 = vmatprep.mubr.f32.mxu0 0.0
        %2189 = vmatmul.mubr.f32.gmra.mxu0 %v2005
        %v2190 = vpop.f32.mrf.mxu0
        %v2191 = vadd.f32 0.0, %v2190
        %v2192 = vpop.f32.mrf.mxu0
        %2193 = vmatprep.mubr.f32.mxu0 0.0
        %2194 = vmatmul.mubr.f32.gmra.mxu0 %v2008
        %v2195 = vpop.f32.mrf.mxu0
        %v2196 = vadd.f32 0.0, %v2195
        %v2197 = vpop.f32.mrf.mxu0
        %2198 = vmatprep.mubr.f32.mxu0 0.0
        %2199 = vmatmul.mubr.f32.gmra.mxu0 %v2011
        %v2200 = vpop.f32.mrf.mxu0
        %v2201 = vadd.f32 0.0, %v2200
        %v2202 = vpop.f32.mrf.mxu0
        %2203 = vmatprep.mubr.f32.mxu0 0.0
        %2204 = vmatmul.mubr.f32.gmra.mxu0 %v2014
        %v2205 = vpop.f32.mrf.mxu0
        %v2206 = vadd.f32 0.0, %v2205
        %v2207 = vpop.f32.mrf.mxu0
        %2208 = vmatprep.mubr.f32.mxu0 0.0
        %2209 = vmatmul.mubr.f32.gmra.mxu0 %v2017
        %v2210 = vpop.f32.mrf.mxu0
        %v2211 = vadd.f32 0.0, %v2210
        %v2212 = vpop.f32.mrf.mxu0
        %2213 = vmatprep.mubr.f32.mxu0 0.0
        %2214 = vmatmul.mubr.f32.gmra.mxu0 %v2020
        %v2215 = vpop.f32.mrf.mxu0
        %v2216 = vadd.f32 0.0, %v2215
        %v2217 = vpop.f32.mrf.mxu0
        %2218 = vmatprep.mubr.f32.mxu0 0.0
        %2219 = vmatmul.mubr.f32.gmra.mxu0 %v2023
        %v2220 = vpop.f32.mrf.mxu0
        %v2221 = vadd.f32 0.0, %v2220
        %v2222 = vpop.f32.mrf.mxu0
        %2223 = vmatprep.mubr.f32.mxu0 0.0
        %2224 = vmatmul.mubr.f32.gmra.mxu0 %v2026
        %v2225 = vpop.f32.mrf.mxu0
        %v2226 = vadd.f32 0.0, %v2225
        %v2227 = vpop.f32.mrf.mxu0
        %2228 = vmatprep.mubr.f32.mxu0 0.0
        %2229 = vmatmul.mubr.f32.gmra.mxu0 %v2029
        %v2230 = vpop.f32.mrf.mxu0
        %v2231 = vadd.f32 0.0, %v2230
        %v2232 = vpop.f32.mrf.mxu0
        %2233 = vmatprep.mubr.f32.mxu0 0.0
        %2234 = vmatmul.mubr.f32.gmra.mxu0 %v2032
        %v2235 = vpop.f32.mrf.mxu0
        %v2236 = vadd.f32 0.0, %v2235
        %v2237 = vpop.f32.mrf.mxu0
        %2238 = vmatprep.mubr.f32.mxu0 0.0
        %2239 = vmatmul.mubr.f32.gmra.mxu0 %v2035
        %v2240 = vpop.f32.mrf.mxu0
        %v2241 = vadd.f32 0.0, %v2240
        %v2242 = vpop.f32.mrf.mxu0
        %2243 = vmatprep.mubr.f32.mxu0 0.0
        %2244 = vmatmul.mubr.f32.gmra.mxu0 %v2038
        %v2245 = vpop.f32.mrf.mxu0
        %v2246 = vadd.f32 0.0, %v2245
        %v2247 = vpop.f32.mrf.mxu0
        %2248 = vmatprep.mubr.f32.mxu0 0.0
        %2249 = vmatmul.mubr.f32.gmra.mxu0 %v2041
        %v2250 = vpop.f32.mrf.mxu0
        %v2251 = vadd.f32 0.0, %v2250
        %v2252 = vpop.f32.mrf.mxu0
        %2253 = vmatprep.mubr.f32.mxu0 0.0
        %2254 = vmatmul.mubr.f32.gmra.mxu0 %v2044
        %v2255 = vpop.f32.mrf.mxu0
        %v2256 = vadd.f32 0.0, %v2255
        %v2257 = vpop.f32.mrf.mxu0
        %2258 = vmatprep.mubr.f32.mxu0 0.0
        %2259 = vmatmul.mubr.f32.gmra.mxu0 %v2047
        %v2260 = vpop.f32.mrf.mxu0
        %v2261 = vadd.f32 0.0, %v2260
        %v2262 = vpop.f32.mrf.mxu0
        %2263 = vdwg.mxu0
        %v2264 = vadd.f32 %v977, %v1716
        %v2265 = vadd.f32 %v978, %v1717
        %v2266 = vadd.f32 %v979, %v1718
        %v2267 = vadd.f32 %v980, %v1719
        %v2268 = vadd.f32 %v981, %v1720
        %v2269 = vadd.f32 %v982, %v1721
        %v2270 = vadd.f32 %v983, %v1722
        %v2271 = vadd.f32 %v984, %v1723
        %v2272 = vadd.f32 %v985, %v1724
        %v2273 = vadd.f32 %v986, %v1725
        %v2274 = vadd.f32 %v987, %v1726
        %v2275 = vadd.f32 %v988, %v1727
        %v2276 = vadd.f32 %v989, %v1728
        %v2277 = vadd.f32 %v990, %v1729
        %v2278 = vadd.f32 %v991, %v1730
        %v2279 = vadd.f32 %v992, %v1731
        %v2280 = vadd.f32 %v993, %v1732
        %v2281 = vadd.f32 %v994, %v1733
        %v2282 = vadd.f32 %v995, %v1734
        %v2283 = vadd.f32 %v996, %v1735
        %v2284 = vadd.f32 %v997, %v1736
        %v2285 = vadd.f32 %v998, %v1737
        %v2286 = vadd.f32 %v999, %v1738
        %v2287 = vadd.f32 %v1000, %v1739
        %v2288 = vadd.f32 %v1001, %v1740
        %v2289 = vadd.f32 %v1002, %v1741
        %v2290 = vadd.f32 %v1003, %v1742
        %v2291 = vadd.f32 %v1004, %v1743
        %v2292 = vadd.f32 %v1005, %v1744
        %v2293 = vadd.f32 %v1006, %v1745
        %v2294 = vadd.f32 %v2264, %v2116
        %v2295 = vadd.f32 %v2265, %v2121
        %v2296 = vadd.f32 %v2266, %v2126
        %v2297 = vadd.f32 %v2267, %v2131
        %v2298 = vadd.f32 %v2268, %v2136
        %v2299 = vadd.f32 %v2269, %v2141
        %v2300 = vadd.f32 %v2270, %v2146
        %v2301 = vadd.f32 %v2271, %v2151
        %v2302 = vadd.f32 %v2272, %v2156
        %v2303 = vadd.f32 %v2273, %v2161
        %v2304 = vadd.f32 %v2274, %v2166
        %v2305 = vadd.f32 %v2275, %v2171
        %v2306 = vadd.f32 %v2276, %v2176
        %v2307 = vadd.f32 %v2277, %v2181
        %v2308 = vadd.f32 %v2278, %v2186
        %v2309 = vadd.f32 %v2279, %v2191
        %v2310 = vadd.f32 %v2280, %v2196
        %v2311 = vadd.f32 %v2281, %v2201
        %v2312 = vadd.f32 %v2282, %v2206
        %v2313 = vadd.f32 %v2283, %v2211
        %v2314 = vadd.f32 %v2284, %v2216
        %v2315 = vadd.f32 %v2285, %v2221
        %v2316 = vadd.f32 %v2286, %v2226
        %v2317 = vadd.f32 %v2287, %v2231
        %v2318 = vadd.f32 %v2288, %v2236
        %v2319 = vadd.f32 %v2289, %v2241
        %v2320 = vadd.f32 %v2290, %v2246
        %v2321 = vadd.f32 %v2291, %v2251
        %v2322 = vadd.f32 %v2292, %v2256
        %v2323 = vadd.f32 %v2293, %v2261
        %v2324 = vlaneseq
        %v2325 = vshrl.u32 %v2324, 7
        %v2326 = vsub.s32 6, %v2325
        %v2327 = vrot.slane %v295, %v2326
        %v2328 = vadd.f32 %v2294, %v2327
        %v2329 = vadd.f32 %v2295, %v2327
        %v2330 = vadd.f32 %v2296, %v2327
        %v2331 = vadd.f32 %v2297, %v2327
        %v2332 = vadd.f32 %v2298, %v2327
        %v2333 = vadd.f32 %v2299, %v2327
        %v2334 = vadd.f32 %v2300, %v2327
        %v2335 = vadd.f32 %v2301, %v2327
        %v2336 = vadd.f32 %v2302, %v2327
        %v2337 = vadd.f32 %v2303, %v2327
        %v2338 = vadd.f32 %v2304, %v2327
        %v2339 = vadd.f32 %v2305, %v2327
        %v2340 = vadd.f32 %v2306, %v2327
        %v2341 = vadd.f32 %v2307, %v2327
        %v2342 = vadd.f32 %v2308, %v2327
        %v2343 = vadd.f32 %v2309, %v2327
        %v2344 = vadd.f32 %v2310, %v2327
        %v2345 = vadd.f32 %v2311, %v2327
        %v2346 = vadd.f32 %v2312, %v2327
        %v2347 = vadd.f32 %v2313, %v2327
        %v2348 = vadd.f32 %v2314, %v2327
        %v2349 = vadd.f32 %v2315, %v2327
        %v2350 = vadd.f32 %v2316, %v2327
        %v2351 = vadd.f32 %v2317, %v2327
        %v2352 = vadd.f32 %v2318, %v2327
        %v2353 = vadd.f32 %v2319, %v2327
        %v2354 = vadd.f32 %v2320, %v2327
        %v2355 = vadd.f32 %v2321, %v2327
        %v2356 = vadd.f32 %v2322, %v2327
        %v2357 = vadd.f32 %v2323, %v2327
        %2358 = vadd.xlane.f32.xlu0 %v2328
        %v2359 = vpop.xlane.xlu0 %2358
        %2360 = vadd.xlane.f32.xlu0 %v2329
        %v2361 = vpop.xlane.xlu0 %2360
        %2362 = vadd.xlane.f32.xlu0 %v2330
        %v2363 = vpop.xlane.xlu0 %2362
        %2364 = vadd.xlane.f32.xlu0 %v2331
        %v2365 = vpop.xlane.xlu0 %2364
        %2366 = vadd.xlane.f32.xlu0 %v2332
        %v2367 = vpop.xlane.xlu0 %2366
        %2368 = vadd.xlane.f32.xlu0 %v2333
        %v2369 = vpop.xlane.xlu0 %2368
        %2370 = vadd.xlane.f32.xlu0 %v2334
        %v2371 = vpop.xlane.xlu0 %2370
        %2372 = vadd.xlane.f32.xlu0 %v2335
        %v2373 = vpop.xlane.xlu0 %2372
        %2374 = vadd.xlane.f32.xlu0 %v2336
        %v2375 = vpop.xlane.xlu0 %2374
        %2376 = vadd.xlane.f32.xlu0 %v2337
        %v2377 = vpop.xlane.xlu0 %2376
        %2378 = vadd.xlane.f32.xlu0 %v2338
        %v2379 = vpop.xlane.xlu0 %2378
        %2380 = vadd.xlane.f32.xlu0 %v2339
        %v2381 = vpop.xlane.xlu0 %2380
        %2382 = vadd.xlane.f32.xlu0 %v2340
        %v2383 = vpop.xlane.xlu0 %2382
        %2384 = vadd.xlane.f32.xlu0 %v2341
        %v2385 = vpop.xlane.xlu0 %2384
        %2386 = vadd.xlane.f32.xlu0 %v2342
        %v2387 = vpop.xlane.xlu0 %2386
        %2388 = vadd.xlane.f32.xlu0 %v2343
        %v2389 = vpop.xlane.xlu0 %2388
        %2390 = vadd.xlane.f32.xlu0 %v2344
        %v2391 = vpop.xlane.xlu0 %2390
        %2392 = vadd.xlane.f32.xlu0 %v2345
        %v2393 = vpop.xlane.xlu0 %2392
        %2394 = vadd.xlane.f32.xlu0 %v2346
        %v2395 = vpop.xlane.xlu0 %2394
        %2396 = vadd.xlane.f32.xlu0 %v2347
        %v2397 = vpop.xlane.xlu0 %2396
        %2398 = vadd.xlane.f32.xlu0 %v2348
        %v2399 = vpop.xlane.xlu0 %2398
        %2400 = vadd.xlane.f32.xlu0 %v2349
        %v2401 = vpop.xlane.xlu0 %2400
        %2402 = vadd.xlane.f32.xlu0 %v2350
        %v2403 = vpop.xlane.xlu0 %2402
        %2404 = vadd.xlane.f32.xlu0 %v2351
        %v2405 = vpop.xlane.xlu0 %2404
        %2406 = vadd.xlane.f32.xlu0 %v2352
        %v2407 = vpop.xlane.xlu0 %2406
        %2408 = vadd.xlane.f32.xlu0 %v2353
        %v2409 = vpop.xlane.xlu0 %2408
        %2410 = vadd.xlane.f32.xlu0 %v2354
        %v2411 = vpop.xlane.xlu0 %2410
        %2412 = vadd.xlane.f32.xlu0 %v2355
        %v2413 = vpop.xlane.xlu0 %2412
        %2414 = vadd.xlane.f32.xlu0 %v2356
        %v2415 = vpop.xlane.xlu0 %2414
        %2416 = vadd.xlane.f32.xlu0 %v2357
        %v2417 = vpop.xlane.xlu0 %2416
        %v2418 = vmul.f32 %v2359, %v668
        %v2419 = vmul.f32 %v2361, %v668
        %v2420 = vmul.f32 %v2363, %v668
        %v2421 = vmul.f32 %v2365, %v668
        %v2422 = vmul.f32 %v2367, %v668
        %v2423 = vmul.f32 %v2369, %v668
        %v2424 = vmul.f32 %v2371, %v668
        %v2425 = vmul.f32 %v2373, %v668
        %v2426 = vmul.f32 %v2375, %v668
        %v2427 = vmul.f32 %v2377, %v668
        %v2428 = vmul.f32 %v2379, %v668
        %v2429 = vmul.f32 %v2381, %v668
        %v2430 = vmul.f32 %v2383, %v668
        %v2431 = vmul.f32 %v2385, %v668
        %v2432 = vmul.f32 %v2387, %v668
        %v2433 = vmul.f32 %v2389, %v668
        %v2434 = vmul.f32 %v2391, %v668
        %v2435 = vmul.f32 %v2393, %v668
        %v2436 = vmul.f32 %v2395, %v668
        %v2437 = vmul.f32 %v2397, %v668
        %v2438 = vmul.f32 %v2399, %v668
        %v2439 = vmul.f32 %v2401, %v668
        %v2440 = vmul.f32 %v2403, %v668
        %v2441 = vmul.f32 %v2405, %v668
        %v2442 = vmul.f32 %v2407, %v668
        %v2443 = vmul.f32 %v2409, %v668
        %v2444 = vmul.f32 %v2411, %v668
        %v2445 = vmul.f32 %v2413, %v668
        %v2446 = vmul.f32 %v2415, %v668
        %v2447 = vmul.f32 %v2417, %v668
        %v2448 = vsub.f32 %v2328, %v2418
        %v2449 = vsub.f32 %v2329, %v2419
        %v2450 = vsub.f32 %v2330, %v2420
        %v2451 = vsub.f32 %v2331, %v2421
        %v2452 = vsub.f32 %v2332, %v2422
        %v2453 = vsub.f32 %v2333, %v2423
        %v2454 = vsub.f32 %v2334, %v2424
        %v2455 = vsub.f32 %v2335, %v2425
        %v2456 = vsub.f32 %v2336, %v2426
        %v2457 = vsub.f32 %v2337, %v2427
        %v2458 = vsub.f32 %v2338, %v2428
        %v2459 = vsub.f32 %v2339, %v2429
        %v2460 = vsub.f32 %v2340, %v2430
        %v2461 = vsub.f32 %v2341, %v2431
        %v2462 = vsub.f32 %v2342, %v2432
        %v2463 = vsub.f32 %v2343, %v2433
        %v2464 = vsub.f32 %v2344, %v2434
        %v2465 = vsub.f32 %v2345, %v2435
        %v2466 = vsub.f32 %v2346, %v2436
        %v2467 = vsub.f32 %v2347, %v2437
        %v2468 = vsub.f32 %v2348, %v2438
        %v2469 = vsub.f32 %v2349, %v2439
        %v2470 = vsub.f32 %v2350, %v2440
        %v2471 = vsub.f32 %v2351, %v2441
        %v2472 = vsub.f32 %v2352, %v2442
        %v2473 = vsub.f32 %v2353, %v2443
        %v2474 = vsub.f32 %v2354, %v2444
        %v2475 = vsub.f32 %v2355, %v2445
        %v2476 = vsub.f32 %v2356, %v2446
        %v2477 = vsub.f32 %v2357, %v2447
        %v2478 = vmul.f32 %v2448, %v2448
        %v2479 = vmul.f32 %v2449, %v2449
        %v2480 = vmul.f32 %v2450, %v2450
        %v2481 = vmul.f32 %v2451, %v2451
        %v2482 = vmul.f32 %v2452, %v2452
        %v2483 = vmul.f32 %v2453, %v2453
        %v2484 = vmul.f32 %v2454, %v2454
        %v2485 = vmul.f32 %v2455, %v2455
        %v2486 = vmul.f32 %v2456, %v2456
        %v2487 = vmul.f32 %v2457, %v2457
        %v2488 = vmul.f32 %v2458, %v2458
        %v2489 = vmul.f32 %v2459, %v2459
        %v2490 = vmul.f32 %v2460, %v2460
        %v2491 = vmul.f32 %v2461, %v2461
        %v2492 = vmul.f32 %v2462, %v2462
        %v2493 = vmul.f32 %v2463, %v2463
        %v2494 = vmul.f32 %v2464, %v2464
        %v2495 = vmul.f32 %v2465, %v2465
        %v2496 = vmul.f32 %v2466, %v2466
        %v2497 = vmul.f32 %v2467, %v2467
        %v2498 = vmul.f32 %v2468, %v2468
        %v2499 = vmul.f32 %v2469, %v2469
        %v2500 = vmul.f32 %v2470, %v2470
        %v2501 = vmul.f32 %v2471, %v2471
        %v2502 = vmul.f32 %v2472, %v2472
        %v2503 = vmul.f32 %v2473, %v2473
        %v2504 = vmul.f32 %v2474, %v2474
        %v2505 = vmul.f32 %v2475, %v2475
        %v2506 = vmul.f32 %v2476, %v2476
        %v2507 = vmul.f32 %v2477, %v2477
        %2508 = vadd.xlane.f32.xlu0 %v2478
        %v2509 = vpop.xlane.xlu0 %2508
        %2510 = vadd.xlane.f32.xlu0 %v2479
        %v2511 = vpop.xlane.xlu0 %2510
        %2512 = vadd.xlane.f32.xlu0 %v2480
        %v2513 = vpop.xlane.xlu0 %2512
        %2514 = vadd.xlane.f32.xlu0 %v2481
        %v2515 = vpop.xlane.xlu0 %2514
        %2516 = vadd.xlane.f32.xlu0 %v2482
        %v2517 = vpop.xlane.xlu0 %2516
        %2518 = vadd.xlane.f32.xlu0 %v2483
        %v2519 = vpop.xlane.xlu0 %2518
        %2520 = vadd.xlane.f32.xlu0 %v2484
        %v2521 = vpop.xlane.xlu0 %2520
        %2522 = vadd.xlane.f32.xlu0 %v2485
        %v2523 = vpop.xlane.xlu0 %2522
        %2524 = vadd.xlane.f32.xlu0 %v2486
        %v2525 = vpop.xlane.xlu0 %2524
        %2526 = vadd.xlane.f32.xlu0 %v2487
        %v2527 = vpop.xlane.xlu0 %2526
        %2528 = vadd.xlane.f32.xlu0 %v2488
        %v2529 = vpop.xlane.xlu0 %2528
        %2530 = vadd.xlane.f32.xlu0 %v2489
        %v2531 = vpop.xlane.xlu0 %2530
        %2532 = vadd.xlane.f32.xlu0 %v2490
        %v2533 = vpop.xlane.xlu0 %2532
        %2534 = vadd.xlane.f32.xlu0 %v2491
        %v2535 = vpop.xlane.xlu0 %2534
        %2536 = vadd.xlane.f32.xlu0 %v2492
        %v2537 = vpop.xlane.xlu0 %2536
        %2538 = vadd.xlane.f32.xlu0 %v2493
        %v2539 = vpop.xlane.xlu0 %2538
        %2540 = vadd.xlane.f32.xlu0 %v2494
        %v2541 = vpop.xlane.xlu0 %2540
        %2542 = vadd.xlane.f32.xlu0 %v2495
        %v2543 = vpop.xlane.xlu0 %2542
        %2544 = vadd.xlane.f32.xlu0 %v2496
        %v2545 = vpop.xlane.xlu0 %2544
        %2546 = vadd.xlane.f32.xlu0 %v2497
        %v2547 = vpop.xlane.xlu0 %2546
        %2548 = vadd.xlane.f32.xlu0 %v2498
        %v2549 = vpop.xlane.xlu0 %2548
        %2550 = vadd.xlane.f32.xlu0 %v2499
        %v2551 = vpop.xlane.xlu0 %2550
        %2552 = vadd.xlane.f32.xlu0 %v2500
        %v2553 = vpop.xlane.xlu0 %2552
        %2554 = vadd.xlane.f32.xlu0 %v2501
        %v2555 = vpop.xlane.xlu0 %2554
        %2556 = vadd.xlane.f32.xlu0 %v2502
        %v2557 = vpop.xlane.xlu0 %2556
        %2558 = vadd.xlane.f32.xlu0 %v2503
        %v2559 = vpop.xlane.xlu0 %2558
        %2560 = vadd.xlane.f32.xlu0 %v2504
        %v2561 = vpop.xlane.xlu0 %2560
        %2562 = vadd.xlane.f32.xlu0 %v2505
        %v2563 = vpop.xlane.xlu0 %2562
        %2564 = vadd.xlane.f32.xlu0 %v2506
        %v2565 = vpop.xlane.xlu0 %2564
        %2566 = vadd.xlane.f32.xlu0 %v2507
        %v2567 = vpop.xlane.xlu0 %2566
        %v2568 = vmul.f32 %v2509, %v668
        %v2569 = vmul.f32 %v2511, %v668
        %v2570 = vmul.f32 %v2513, %v668
        %v2571 = vmul.f32 %v2515, %v668
        %v2572 = vmul.f32 %v2517, %v668
        %v2573 = vmul.f32 %v2519, %v668
        %v2574 = vmul.f32 %v2521, %v668
        %v2575 = vmul.f32 %v2523, %v668
        %v2576 = vmul.f32 %v2525, %v668
        %v2577 = vmul.f32 %v2527, %v668
        %v2578 = vmul.f32 %v2529, %v668
        %v2579 = vmul.f32 %v2531, %v668
        %v2580 = vmul.f32 %v2533, %v668
        %v2581 = vmul.f32 %v2535, %v668
        %v2582 = vmul.f32 %v2537, %v668
        %v2583 = vmul.f32 %v2539, %v668
        %v2584 = vmul.f32 %v2541, %v668
        %v2585 = vmul.f32 %v2543, %v668
        %v2586 = vmul.f32 %v2545, %v668
        %v2587 = vmul.f32 %v2547, %v668
        %v2588 = vmul.f32 %v2549, %v668
        %v2589 = vmul.f32 %v2551, %v668
        %v2590 = vmul.f32 %v2553, %v668
        %v2591 = vmul.f32 %v2555, %v668
        %v2592 = vmul.f32 %v2557, %v668
        %v2593 = vmul.f32 %v2559, %v668
        %v2594 = vmul.f32 %v2561, %v668
        %v2595 = vmul.f32 %v2563, %v668
        %v2596 = vmul.f32 %v2565, %v668
        %v2597 = vmul.f32 %v2567, %v668
        %v2598 = vadd.f32 %v2568, 1e-12
        %v2599 = vadd.f32 %v2569, 1e-12
        %v2600 = vadd.f32 %v2570, 1e-12
        %v2601 = vadd.f32 %v2571, 1e-12
        %v2602 = vadd.f32 %v2572, 1e-12
        %v2603 = vadd.f32 %v2573, 1e-12
        %v2604 = vadd.f32 %v2574, 1e-12
        %v2605 = vadd.f32 %v2575, 1e-12
        %v2606 = vadd.f32 %v2576, 1e-12
        %v2607 = vadd.f32 %v2577, 1e-12
        %v2608 = vadd.f32 %v2578, 1e-12
        %v2609 = vadd.f32 %v2579, 1e-12
        %v2610 = vadd.f32 %v2580, 1e-12
        %v2611 = vadd.f32 %v2581, 1e-12
        %v2612 = vadd.f32 %v2582, 1e-12
        %v2613 = vadd.f32 %v2583, 1e-12
        %v2614 = vadd.f32 %v2584, 1e-12
        %v2615 = vadd.f32 %v2585, 1e-12
        %v2616 = vadd.f32 %v2586, 1e-12
        %v2617 = vadd.f32 %v2587, 1e-12
        %v2618 = vadd.f32 %v2588, 1e-12
        %v2619 = vadd.f32 %v2589, 1e-12
        %v2620 = vadd.f32 %v2590, 1e-12
        %v2621 = vadd.f32 %v2591, 1e-12
        %v2622 = vadd.f32 %v2592, 1e-12
        %v2623 = vadd.f32 %v2593, 1e-12
        %v2624 = vadd.f32 %v2594, 1e-12
        %v2625 = vadd.f32 %v2595, 1e-12
        %v2626 = vadd.f32 %v2596, 1e-12
        %v2627 = vadd.f32 %v2597, 1e-12
        %v2628 = vrsqrt.pop %v2598
        %v2629 = vrsqrt.pop %v2599
        %v2630 = vrsqrt.pop %v2600
        %v2631 = vrsqrt.pop %v2601
        %v2632 = vrsqrt.pop %v2602
        %v2633 = vrsqrt.pop %v2603
        %v2634 = vrsqrt.pop %v2604
        %v2635 = vrsqrt.pop %v2605
        %v2636 = vrsqrt.pop %v2606
        %v2637 = vrsqrt.pop %v2607
        %v2638 = vrsqrt.pop %v2608
        %v2639 = vrsqrt.pop %v2609
        %v2640 = vrsqrt.pop %v2610
        %v2641 = vrsqrt.pop %v2611
        %v2642 = vrsqrt.pop %v2612
        %v2643 = vrsqrt.pop %v2613
        %v2644 = vrsqrt.pop %v2614
        %v2645 = vrsqrt.pop %v2615
        %v2646 = vrsqrt.pop %v2616
        %v2647 = vrsqrt.pop %v2617
        %v2648 = vrsqrt.pop %v2618
        %v2649 = vrsqrt.pop %v2619
        %v2650 = vrsqrt.pop %v2620
        %v2651 = vrsqrt.pop %v2621
        %v2652 = vrsqrt.pop %v2622
        %v2653 = vrsqrt.pop %v2623
        %v2654 = vrsqrt.pop %v2624
        %v2655 = vrsqrt.pop %v2625
        %v2656 = vrsqrt.pop %v2626
        %v2657 = vrsqrt.pop %v2627
        %v2658 = vmul.f32 %v2448, %v2628
        %v2659 = vmul.f32 %v2449, %v2629
        %v2660 = vmul.f32 %v2450, %v2630
        %v2661 = vmul.f32 %v2451, %v2631
        %v2662 = vmul.f32 %v2452, %v2632
        %v2663 = vmul.f32 %v2453, %v2633
        %v2664 = vmul.f32 %v2454, %v2634
        %v2665 = vmul.f32 %v2455, %v2635
        %v2666 = vmul.f32 %v2456, %v2636
        %v2667 = vmul.f32 %v2457, %v2637
        %v2668 = vmul.f32 %v2458, %v2638
        %v2669 = vmul.f32 %v2459, %v2639
        %v2670 = vmul.f32 %v2460, %v2640
        %v2671 = vmul.f32 %v2461, %v2641
        %v2672 = vmul.f32 %v2462, %v2642
        %v2673 = vmul.f32 %v2463, %v2643
        %v2674 = vmul.f32 %v2464, %v2644
        %v2675 = vmul.f32 %v2465, %v2645
        %v2676 = vmul.f32 %v2466, %v2646
        %v2677 = vmul.f32 %v2467, %v2647
        %v2678 = vmul.f32 %v2468, %v2648
        %v2679 = vmul.f32 %v2469, %v2649
        %v2680 = vmul.f32 %v2470, %v2650
        %v2681 = vmul.f32 %v2471, %v2651
        %v2682 = vmul.f32 %v2472, %v2652
        %v2683 = vmul.f32 %v2473, %v2653
        %v2684 = vmul.f32 %v2474, %v2654
        %v2685 = vmul.f32 %v2475, %v2655
        %v2686 = vmul.f32 %v2476, %v2656
        %v2687 = vmul.f32 %v2477, %v2657
        %v2688 = vlaneseq
        %v2689 = vshrl.u32 %v2688, 7
        %v2690 = vsub.s32 7, %v2689
        %v2691 = vrot.slane %v295, %v2690
        %v2692 = vmul.f32 %v2658, %v2691
        %v2693 = vmul.f32 %v2659, %v2691
        %v2694 = vmul.f32 %v2660, %v2691
        %v2695 = vmul.f32 %v2661, %v2691
        %v2696 = vmul.f32 %v2662, %v2691
        %v2697 = vmul.f32 %v2663, %v2691
        %v2698 = vmul.f32 %v2664, %v2691
        %v2699 = vmul.f32 %v2665, %v2691
        %v2700 = vmul.f32 %v2666, %v2691
        %v2701 = vmul.f32 %v2667, %v2691
        %v2702 = vmul.f32 %v2668, %v2691
        %v2703 = vmul.f32 %v2669, %v2691
        %v2704 = vmul.f32 %v2670, %v2691
        %v2705 = vmul.f32 %v2671, %v2691
        %v2706 = vmul.f32 %v2672, %v2691
        %v2707 = vmul.f32 %v2673, %v2691
        %v2708 = vmul.f32 %v2674, %v2691
        %v2709 = vmul.f32 %v2675, %v2691
        %v2710 = vmul.f32 %v2676, %v2691
        %v2711 = vmul.f32 %v2677, %v2691
        %v2712 = vmul.f32 %v2678, %v2691
        %v2713 = vmul.f32 %v2679, %v2691
        %v2714 = vmul.f32 %v2680, %v2691
        %v2715 = vmul.f32 %v2681, %v2691
        %v2716 = vmul.f32 %v2682, %v2691
        %v2717 = vmul.f32 %v2683, %v2691
        %v2718 = vmul.f32 %v2684, %v2691
        %v2719 = vmul.f32 %v2685, %v2691
        %v2720 = vmul.f32 %v2686, %v2691
        %v2721 = vmul.f32 %v2687, %v2691
        %v2722 = vlaneseq
        %v2723 = vshrl.u32 %v2722, 7
        %v2724 = vsub.s32 0, %v2723
        %v2725 = vrot.slane %v296, %v2724
        %v2726 = vadd.f32 %v2692, %v2725
        %v2727 = vadd.f32 %v2693, %v2725
        %v2728 = vadd.f32 %v2694, %v2725
        %v2729 = vadd.f32 %v2695, %v2725
        %v2730 = vadd.f32 %v2696, %v2725
        %v2731 = vadd.f32 %v2697, %v2725
        %v2732 = vadd.f32 %v2698, %v2725
        %v2733 = vadd.f32 %v2699, %v2725
        %v2734 = vadd.f32 %v2700, %v2725
        %v2735 = vadd.f32 %v2701, %v2725
        %v2736 = vadd.f32 %v2702, %v2725
        %v2737 = vadd.f32 %v2703, %v2725
        %v2738 = vadd.f32 %v2704, %v2725
        %v2739 = vadd.f32 %v2705, %v2725
        %v2740 = vadd.f32 %v2706, %v2725
        %v2741 = vadd.f32 %v2707, %v2725
        %v2742 = vadd.f32 %v2708, %v2725
        %v2743 = vadd.f32 %v2709, %v2725
        %v2744 = vadd.f32 %v2710, %v2725
        %v2745 = vadd.f32 %v2711, %v2725
        %v2746 = vadd.f32 %v2712, %v2725
        %v2747 = vadd.f32 %v2713, %v2725
        %v2748 = vadd.f32 %v2714, %v2725
        %v2749 = vadd.f32 %v2715, %v2725
        %v2750 = vadd.f32 %v2716, %v2725
        %v2751 = vadd.f32 %v2717, %v2725
        %v2752 = vadd.f32 %v2718, %v2725
        %v2753 = vadd.f32 %v2719, %v2725
        %v2754 = vadd.f32 %v2720, %v2725
        %v2755 = vadd.f32 %v2721, %v2725
        %2756 = vst [vmem:[%s286] sm:$0xff] %v2726
        %2757 = vst [vmem:[%s286 + $0x8] sm:$0xff] %v2727
        %2758 = vst [vmem:[%s286 + $0x10] sm:$0xff] %v2728
        %2759 = vst [vmem:[%s286 + $0x18] sm:$0xff] %v2729
        %2760 = vst [vmem:[%s286 + $0x20] sm:$0xff] %v2730
        %2761 = vst [vmem:[%s286 + $0x28] sm:$0xff] %v2731
        %2762 = vst [vmem:[%s286 + $0x30] sm:$0xff] %v2732
        %2763 = vst [vmem:[%s286 + $0x38] sm:$0xff] %v2733
        %2764 = vst [vmem:[%s286 + $0x40] sm:$0xff] %v2734
        %2765 = vst [vmem:[%s286 + $0x48] sm:$0xff] %v2735
        %2766 = vst [vmem:[%s286 + $0x50] sm:$0xff] %v2736
        %2767 = vst [vmem:[%s286 + $0x58] sm:$0xff] %v2737
        %2768 = vst [vmem:[%s286 + $0x60] sm:$0xff] %v2738
        %2769 = vst [vmem:[%s286 + $0x68] sm:$0xff] %v2739
        %2770 = vst [vmem:[%s286 + $0x70] sm:$0xff] %v2740
        %2771 = vst [vmem:[%s286 + $0x78] sm:$0xff] %v2741
        %2772 = vst [vmem:[%s286 + $0x80] sm:$0xff] %v2742
        %2773 = vst [vmem:[%s286 + $0x88] sm:$0xff] %v2743
        %2774 = vst [vmem:[%s286 + $0x90] sm:$0xff] %v2744
        %2775 = vst [vmem:[%s286 + $0x98] sm:$0xff] %v2745
        %2776 = vst [vmem:[%s286 + $0xa0] sm:$0xff] %v2746
        %2777 = vst [vmem:[%s286 + $0xa8] sm:$0xff] %v2747
        %2778 = vst [vmem:[%s286 + $0xb0] sm:$0xff] %v2748
        %2779 = vst [vmem:[%s286 + $0xb8] sm:$0xff] %v2749
        %2780 = vst [vmem:[%s286 + $0xc0] sm:$0xff] %v2750
        %2781 = vst [vmem:[%s286 + $0xc8] sm:$0xff] %v2751
        %2782 = vst [vmem:[%s286 + $0xd0] sm:$0xff] %v2752
        %2783 = vst [vmem:[%s286 + $0xd8] sm:$0xff] %v2753
        %2784 = vst [vmem:[%s286 + $0xe0] sm:$0xff] %v2754
        %2785 = vst [vmem:[%s286 + $0xe8] sm:$0xff] %v2755
        %s2786 = sand.u32 %s167, 1
        %s2787 = scalar_lea.sflag [#allocation4], %s2786
        %s2788 = sand.u32 %s167, 1
        %s2789 = smul.addr %s2788, 240
        %s2790 = scalar_lea.vmem [#allocation5], %s2789
        // Predicated region
        $region49: #{tpu_custom_call.1} parent=43 // pred_check
          %p2791 = pneg %p177
        $region50: #{tpu_custom_call.1} parent=43 // pred_check_branch
          %2793 = sbr.rel (%p2791) target = $region52
        $region51: #{tpu_custom_call.1} parent=43 // pred_region
          %s2794 = smul.u32 30, %s23
          %s2796 = ssub.s32 3840, 3840
          %2797 = vsyncadd %s2787, %s2796
          %s2798 = smul.addr %s2794, 128
          %s2799 = scalar_lea.hbm %s6, %s2798
          %s2800 = sshll.u32 %s2790, 4
          %s2801 = int_to_ptr.vmem [resolvable:$true] %s2800
          %2806 = dma.vmem_to_hbm [thread:$0]  %s2801, 3840, %s2799, %s2787, 128, 128, 8
        $region52: #{tpu_custom_call.1} parent=43 // pred_fallthru
          _
      $region44: #{tpu_custom_call.1} parent=5 // pred_fallthru
        _
      %p2807 = scmp.le.s32.totalorder 2, %s18
      // Predicated region
      $region53: #{tpu_custom_call.1} parent=5 // pred_check
        %p2808 = pneg %p2807
      $region54: #{tpu_custom_call.1} parent=5 // pred_check_branch
        %2810 = sbr.rel (%p2808) target = $region56
      $region55: #{tpu_custom_call.1} parent=5 // pred_region
        %s2811 = ssub.s32 %s18, 2
        // Predicated region
        $region57: #{tpu_custom_call.1} parent=55 // pred_check
          %p2812 = pneg %p183
        $region58: #{tpu_custom_call.1} parent=55 // pred_check_branch
          %2814 = sbr.rel (%p2812) target = $region60
        $region59: #{tpu_custom_call.1} parent=55 // pred_region
          %s2815 = sand.u32 %s168, 1
          %s2816 = scalar_lea.sflag [#allocation4], %s2815
          %s2817 = sand.u32 %s168, 1
          %s2818 = smul.addr %s2817, 240
          %s2819 = scalar_lea.vmem [#allocation5], %s2818
          %2820 = dma.done %s2816, 3840
        $region60: #{tpu_custom_call.1} parent=55 // pred_fallthru
          _
      $region56: #{tpu_custom_call.1} parent=5 // pred_fallthru
        _
    $region6: #{tpu_custom_call.1} parent=1 // loop_footer
      %s22 = sadd.s32 1, %s18
    $region7: #{tpu_custom_call.1} parent=1 // loop_footer_branch
      %17 = sbr.rel target = $region3
    $region8: #{tpu_custom_call.1} parent=1 // loop_exit
      _
    %2821 = vsyncpa [#allocation3], 1
    %s2822 = scalar_lea.sflag [#allocation3], 1
    %2823 = vsyncpa %s2822, 1
    %2824 = vsyncpa [#allocation4], 1
    %s2825 = scalar_lea.sflag [#allocation4], 1
    %2826 = vsyncpa %s2825, 1

</llo_original>
